<compile_context>
chip_gen: v7x
topology: tpu7x:2x2x1
jax: 0.10.0
libtpu: 0.0.40
codegen_flags: <defaults>
</compile_context>

<pallas_src>
import functools

import jax
import jax.numpy as jnp
import numpy as np
from jax.experimental import pallas as pl
from jax.experimental.pallas import tpu as pltpu


# ----------------------------- Kernel ----------------------------------------


def _fused_kernel(x_ref, aux_ref, w_ref, wv_ref, bias_ref, out_ref, *, d_ego):
    """Fused projection -> score combine -> normalize -> value matmul -> bias.

    w_ref columns: [ w_ego/d_in | (w_qg/d_in^2)*kg | w_ql/d_in^2 ]
    aux_ref columns: [ ones(d_ego+d_global) | ksum ]  (per-row multiplier slab)
    so  scores = proj * where(col < d_ego, proj, aux)
        gives  [ ego^2 | global_scores | local_scores_summed_over_neighbors ].
    """
    proj = jnp.dot(x_ref[...], w_ref[...], preferred_element_type=jnp.float32)
    col = jax.lax.broadcasted_iota(jnp.int32, proj.shape, 1)
    scores = proj * jnp.where(col < d_ego, proj, aux_ref[...])

    sum_exp = 0.001 + jnp.sum(scores, axis=-1, keepdims=True)
    r = pl.reciprocal(sum_exp, approx=True)        # EUP slot
    r = r * (2.0 - sum_exp * r)                    # one Newton step -> f32 accurate

    res = jnp.dot(scores * r, wv_ref[...], preferred_element_type=jnp.float32)
    out_ref[...] = res + bias_ref[...]             # single full-width store


# --------------------------- Parameters --------------------------------------


def init_params(key, d_in, d_ego, d_local, d_global, d_out):
    """Deterministic parameter setup mirroring the PyTorch __init__ shapes.
    The non-negativity transforms (elu+1 / normalized sigmoid) are parameter-
    sized glue applied once here, outside the kernel."""
    ks = jax.random.split(key, 8)
    elu = jax.nn.elu

    w_ego_raw = jax.random.normal(ks[0], (d_ego, d_in)) * 0.1          # nn.Linear(d_in, d_ego)
    w_ve_raw = jax.random.normal(ks[1], (d_out, d_ego)) - 2.0          # BidirNonNegLinear
    w_ql_raw = jax.random.normal(ks[2], (d_local, d_in)) / 10 - 2.0    # NormNonNegLinear
    w_kl_raw = jax.random.normal(ks[3], (d_local, d_in)) / 10 - 2.0    # NonNegLinear
    w_vl_raw = jax.random.normal(ks[4], (d_out, d_local)) / 10 - 2.0   # NonNegLinear
    w_qg_raw = jax.random.normal(ks[5], (d_global, d_in)) / 10 - 2.0   # NormNonNegLinear
    w_kg_raw = jax.random.normal(ks[6], (d_global, d_in)) / 10 - 2.0   # NonNegLinear
    w_vg_raw = jax.random.normal(ks[7], (d_out, d_global)) / 10 - 2.0  # NonNegLinear
    bias_raw = jnp.zeros((1, d_out))                                   # NonNegBias

    def norm_nonneg(w):
        t = jax.nn.sigmoid(w)
        return t / jnp.sum(t)

    return dict(
        w_ego=jnp.asarray(w_ego_raw.T, jnp.float32),             # (d_in, d_ego)
        w_ql=jnp.asarray(norm_nonneg(w_ql_raw).T, jnp.float32),  # (d_in, d_local)
        w_kl=jnp.asarray((elu(w_kl_raw) + 1.0).T, jnp.float32),
        w_qg=jnp.asarray(norm_nonneg(w_qg_raw).T, jnp.float32),  # (d_in, d_global)
        w_kg=jnp.asarray((elu(w_kg_raw) + 1.0).T, jnp.float32),
        w_ve=jnp.asarray((elu(w_ve_raw) + 1.0).T, jnp.float32),  # (d_ego, d_out)
        w_vl=jnp.asarray((elu(w_vl_raw) + 1.0).T, jnp.float32),  # (d_local, d_out)
        w_vg=jnp.asarray((elu(w_vg_raw) + 1.0).T, jnp.float32),  # (d_global, d_out)
        bias=jnp.asarray(elu(bias_raw) + 1.0, jnp.float32),      # (1, d_out)
    )


def fuse_params(params, d_in):
    """Fold 1/d_in scalings into the weights and pre-concatenate the value
    weights so the kernel issues two wide MXU matmuls (done once)."""
    return dict(
        w_ego_s=params['w_ego'] / d_in,                  # squared in-kernel -> 1/d_in^2
        w_qg_s=params['w_qg'] / (d_in * d_in),
        w_ql_s=params['w_ql'] / (d_in * d_in),
        w_kl=params['w_kl'],                             # (d_in, d_local)
        w_kg=params['w_kg'],                             # (d_in, d_global)
        wv_cat=jnp.concatenate(                          # (d_ego+d_global+d_local, d_out)
            [params['w_ve'], params['w_vg'], params['w_vl']], axis=0).astype(jnp.float32),
        bias=params['bias'],                             # (1, d_out)
        d_ego=params['w_ego'].shape[1],
        d_local=params['w_ql'].shape[1],
        d_global=params['w_qg'].shape[1],
        d_out=params['bias'].shape[1],
    )


# ----------------------------- Forward ---------------------------------------


def _pick_tile_n(n_rows, row_bytes, weight_bytes):
    """Largest power-of-two row tile whose double-buffered blocks + resident
    weights fit the device VMEM budget, keeping at least 2 grid steps so a
    v7x megacore can use both TensorCores."""
    try:
        vmem_bytes = pltpu.get_tpu_info().vmem_capacity_bytes   # 64 MiB/TC on v7x
    except Exception:
        vmem_bytes = 64 * 1024 * 1024
    budget = max(vmem_bytes // 2 - 2 * weight_bytes, 1 << 20)
    best = None
    t = 8                                       # sublane multiple (8,128) rule
    while t <= n_rows:
        if (n_rows % t == 0) and (2 * t * row_bytes <= budget) and (n_rows // t >= 2):
            best = t
        t *= 2
    if best is not None:
        return best
    # Awkward (non power-of-two-divisible) or tiny N: one full-size block.
    return n_rows


def bilinear_attention_forward(adj_list, x, fused):
    """Forward pass equivalent to BilinearAttention.forward(adj_list, x) with
    sparse_graph=True, masked_x=None, x_bar=None, get_details=False."""
    N, d_in = x.shape
    d_ego, d_local = fused['d_ego'], fused['d_local']
    d_global, d_out = fused['d_global'], fused['d_out']
    E = adj_list.shape[1]
    assert E % N == 0, "adj_list columns must be grouped per destination node"
    n = E // N
    f32 = jnp.float32
    d_eg = d_ego + d_global
    d_c2 = d_eg + d_local

    # --- Hoisted XLA glue (all parameter/graph-sized, no big intermediates) ---
    # kg folded directly into the q_global weight columns (column-wise scale).
    kg = jnp.mean(x, axis=0, keepdims=True) @ fused['w_kg']          # (1, d_global)
    w_cat = jnp.concatenate(
        [fused['w_ego_s'], fused['w_qg_s'] * kg, fused['w_ql_s']], axis=1)  # (d_in, d_c2)

    # k_local projection + masked neighbor gather-sum: sum_j qe*ke == ql * ksum,
    # so only the (N, d_local) ksum ever touches HBM.
    # TODO(synk): the data-dependent per-edge gather stays in XLA glue; it could
    # move in-kernel via PrefetchScalarGridSpec scalar-prefetched adj indices +
    # a DMA/one-hot gather over a VMEM-resident k_local in a two-phase grid.
    kl = x @ fused['w_kl']                                           # (N, d_local)
    ke = jnp.take(kl, adj_list[0, :], axis=0)                        # (E, d_local)
    if adj_list.shape[0] == 3:
        ke = jnp.where((adj_list[2, :] == 0)[:, None], 0.0, ke)      # fold edge mask
    ksum = ke.reshape(N, n, d_local).sum(axis=1)                     # (N, d_local)

    # Per-row multiplier slab: ego cols are replaced by proj in-kernel (square),
    # global cols multiply by 1 (kg already folded into w_cat), local cols by ksum.
    aux = jnp.concatenate([jnp.ones((N, d_eg), f32), ksum], axis=1)  # (N, d_c2)

    row_bytes = 4 * (d_in + d_c2 + d_out)
    weight_bytes = 4 * (d_in * d_c2 + d_c2 * d_out + d_out)
    tile_n = _pick_tile_n(N, row_bytes, weight_bytes)
    grid = (N // tile_n,)

    out = pl.pallas_call(
        functools.partial(_fused_kernel, d_ego=d_ego),
        out_shape=jax.ShapeDtypeStruct((N, d_out), f32),
        grid=grid,
        in_specs=[pl.BlockSpec((tile_n, d_in), lambda i: (i, 0)),
                  pl.BlockSpec((tile_n, d_c2), lambda i: (i, 0)),
                  pl.BlockSpec((d_in, d_c2), lambda i: (0, 0)),      # weights stay resident
                  pl.BlockSpec((d_c2, d_out), lambda i: (0, 0)),
                  pl.BlockSpec((1, d_out), lambda i: (0, 0))],
        out_specs=pl.BlockSpec((tile_n, d_out), lambda i: (i, 0)),
        compiler_params=pltpu.CompilerParams(
            dimension_semantics=("parallel",),
            vmem_limit_bytes=32 * 1024 * 1024),
    )(x, aux, w_cat, fused['wv_cat'], fused['bias'])
    return out


# ----------------------------- Reference --------------------------------------


def reference_forward(adj_list, x, params):
    """Pure-JAX reference matching the PyTorch forward semantics exactly."""
    N, d_in = x.shape
    x_bar = jnp.mean(x, axis=0, keepdims=True)
    ego_emb = x @ params['w_ego']
    ego_scores = (ego_emb / d_in) ** 2
    ql = x @ params['w_ql']
    kl = x @ params['w_kl']
    qe = ql[adj_list[1, :], :]
    ke = kl[adj_list[0, :], :]
    ls = qe * ke
    if adj_list.shape[0] == 3:
        ls = jnp.where((adj_list[2, :] == 0)[:, None], 0.0, ls)
    n = ls.shape[0] // N
    ls = ls.reshape(N, n, -1) / d_in / d_in
    ls = jnp.swapaxes(ls, -1, -2)                   # (N, d_local, n)
    qg = x @ params['w_qg']
    kg = x_bar @ params['w_kg']
    gs = qg * kg / d_in / d_in                      # (N, d_global)
    exp_local = jnp.sum(ls, axis=-1)                # (N, d_local)
    sum_exp = (0.001 + jnp.sum(ego_scores, -1, keepdims=True)
               + jnp.sum(exp_local, -1, keepdims=True)
               + jnp.sum(gs, -1, keepdims=True))
    res = ((ego_scores / sum_exp) @ params['w_ve']
           + (exp_local / sum_exp) @ params['w_vl']
           + (gs / sum_exp) @ params['w_vg'])
    return res + params['bias']


if __name__ == "__main__":
    N, d_in, d_ego, d_local, d_global, d_out = 1024, 32, 8, 8, 8, 32
    n_neighbors = 4
    E = N * n_neighbors

    key = jax.random.PRNGKey(0)
    kx, kadj, kmask, kp = jax.random.split(key, 4)

    x = jax.random.uniform(kx, (N, d_in), dtype=jnp.float32)
    src = jax.random.randint(kadj, (E,), 0, N)                      # neighbor (source) ids
    dst = jnp.repeat(jnp.arange(N), n_neighbors)                    # edges grouped per dest
    edge_on = jax.random.bernoulli(kmask, 0.8, (E,)).astype(jnp.int32)
    adj_list = jnp.stack([src, dst, edge_on]).astype(jnp.int32)     # (3, E)

    params = init_params(kp, d_in, d_ego, d_local, d_global, d_out)
    fused = fuse_params(params, d_in)

    out = jax.block_until_ready(bilinear_attention_forward(adj_list, x, fused))
    ref = reference_forward(adj_list, x, params)
    np.testing.assert_allclose(np.asarray(out), np.asarray(ref), rtol=1e-4, atol=1e-5)
    print("KERNEL_OK")
</pallas_src>

<mosaic_0001>
module attributes {stable_mosaic.version = 11 : i64} {
  func.func @_fused_kernel(%arg0: i32, %arg1: memref<512x32xf32, #tpu.memory_space<vmem>>, %arg2: memref<512x24xf32, #tpu.memory_space<vmem>>, %arg3: memref<32x24xf32, #tpu.memory_space<vmem>>, %arg4: memref<24x32xf32, #tpu.memory_space<vmem>>, %arg5: memref<1x32xf32, #tpu.memory_space<vmem>>, %arg6: memref<512x32xf32, #tpu.memory_space<vmem>>) attributes {dimension_semantics = [#tpu.dimension_semantics<parallel>], iteration_bounds = array<i64: 2>, scalar_prefetch = 0 : i64, scratch_operands = 0 : i64, tpu.core_type = #tpu.core_type<tc>, window_params = [{transform_indices = @transform_0, window_bounds = array<i64: 512, 32>}, {transform_indices = @transform_1, window_bounds = array<i64: 512, 24>}, {pipeline_mode = #tpu.pipeline_mode<synchronous>, transform_indices = @transform_2, window_bounds = array<i64: 32, 24>}, {pipeline_mode = #tpu.pipeline_mode<synchronous>, transform_indices = @transform_3, window_bounds = array<i64: 24, 32>}, {pipeline_mode = #tpu.pipeline_mode<synchronous>, transform_indices = @transform_4, window_bounds = array<i64: 1, 32>}, {transform_indices = @transform_5, window_bounds = array<i64: 512, 32>}]} {
    %c0 = arith.constant 0 : index
    %c0_0 = arith.constant 0 : index
    %0 = vector.load %arg1[%c0, %c0_0] : memref<512x32xf32, #tpu.memory_space<vmem>>, vector<512x32xf32>
    %c0_1 = arith.constant 0 : index
    %c0_2 = arith.constant 0 : index
    %1 = vector.load %arg3[%c0_1, %c0_2] : memref<32x24xf32, #tpu.memory_space<vmem>>, vector<32x24xf32>
    %cst = arith.constant dense<0.000000e+00> : vector<512x24xf32>
    %2 = tpu.matmul %0, %1, %cst {dimension_numbers = #tpu.dot_dimension_numbers<[1], [0], [0], [1], [0, 0, 1, 1], [], []>} : vector<512x32xf32>, vector<32x24xf32>, vector<512x24xf32> -> vector<512x24xf32>
    %3 = tpu.iota {dimensions = array<i32: 1>} : vector<512x24xi32>
    %c8_i32 = arith.constant 8 : i32
    %4 = vector.broadcast %c8_i32 : i32 to vector<512x24xi32>
    %5 = arith.cmpi slt, %3, %4 : vector<512x24xi32>
    %c0_3 = arith.constant 0 : index
    %c0_4 = arith.constant 0 : index
    %6 = vector.load %arg2[%c0_3, %c0_4] : memref<512x24xf32, #tpu.memory_space<vmem>>, vector<512x24xf32>
    %7 = arith.select %5, %2, %6 : vector<512x24xi1>, vector<512x24xf32>
    %8 = arith.mulf %2, %7 : vector<512x24xf32>
    %cst_5 = arith.constant dense<0.000000e+00> : vector<512xf32>
    %9 = vector.multi_reduction <add>, %8, %cst_5 [1] : vector<512x24xf32> to vector<512xf32>
    %10 = vector.shape_cast %9 : vector<512xf32> to vector<512x1xf32>
    %cst_6 = arith.constant 1.000000e-03 : f32
    %11 = vector.broadcast %cst_6 : f32 to vector<512x1xf32>
    %12 = arith.addf %11, %10 : vector<512x1xf32>
    %13 = tpu.reciprocal %12 {approx = true} : vector<512x1xf32> -> vector<512x1xf32>
    %14 = arith.mulf %12, %13 : vector<512x1xf32>
    %cst_7 = arith.constant 2.000000e+00 : f32
    %15 = vector.broadcast %cst_7 : f32 to vector<512x1xf32>
    %16 = arith.subf %15, %14 : vector<512x1xf32>
    %17 = arith.mulf %13, %16 : vector<512x1xf32>
    %18 = vector.broadcast %17 : vector<512x1xf32> to vector<512x24xf32>
    %19 = arith.mulf %8, %18 : vector<512x24xf32>
    %c0_8 = arith.constant 0 : index
    %c0_9 = arith.constant 0 : index
    %20 = vector.load %arg4[%c0_8, %c0_9] : memref<24x32xf32, #tpu.memory_space<vmem>>, vector<24x32xf32>
    %cst_10 = arith.constant dense<0.000000e+00> : vector<512x32xf32>
    %21 = tpu.matmul %19, %20, %cst_10 {dimension_numbers = #tpu.dot_dimension_numbers<[1], [0], [0], [1], [0, 0, 1, 1], [], []>} : vector<512x24xf32>, vector<24x32xf32>, vector<512x32xf32> -> vector<512x32xf32>
    %c0_11 = arith.constant 0 : index
    %c0_12 = arith.constant 0 : index
    %22 = vector.load %arg5[%c0_11, %c0_12] : memref<1x32xf32, #tpu.memory_space<vmem>>, vector<1x32xf32>
    %23 = vector.broadcast %22 : vector<1x32xf32> to vector<512x32xf32>
    %24 = arith.addf %21, %23 : vector<512x32xf32>
    %c0_13 = arith.constant 0 : index
    %c0_14 = arith.constant 0 : index
    %25 = vector.load %arg6[%c0_13, %c0_14] : memref<512x32xf32, #tpu.memory_space<vmem>>, vector<512x32xf32>
    tpu.vector_store %arg6[%c0_13, %c0_14], %24 {strides = array<i32>} : memref<512x32xf32, #tpu.memory_space<vmem>>, vector<512x32xf32>,
    return
  }
  func.func @transform_0(%arg0: i32) -> (i32, i32) {
    %c0_i32 = arith.constant 0 : i32
    %c0_i32_0 = arith.constant 0 : i32
    return %arg0, %c0_i32 : i32, i32
  }
  func.func @transform_1(%arg0: i32) -> (i32, i32) {
    %c0_i32 = arith.constant 0 : i32
    %c0_i32_0 = arith.constant 0 : i32
    return %arg0, %c0_i32 : i32, i32
  }
  func.func @transform_2(%arg0: i32) -> (i32, i32) {
    %c0_i32 = arith.constant 0 : i32
    %c0_i32_0 = arith.constant 0 : i32
    %c0_i32_1 = arith.constant 0 : i32
    return %c0_i32, %c0_i32_0 : i32, i32
  }
  func.func @transform_3(%arg0: i32) -> (i32, i32) {
    %c0_i32 = arith.constant 0 : i32
    %c0_i32_0 = arith.constant 0 : i32
    %c0_i32_1 = arith.constant 0 : i32
    return %c0_i32, %c0_i32_0 : i32, i32
  }
  func.func @transform_4(%arg0: i32) -> (i32, i32) {
    %c0_i32 = arith.constant 0 : i32
    %c0_i32_0 = arith.constant 0 : i32
    %c0_i32_1 = arith.constant 0 : i32
    return %c0_i32, %c0_i32_0 : i32, i32
  }
  func.func @transform_5(%arg0: i32) -> (i32, i32) {
    %c0_i32 = arith.constant 0 : i32
    %c0_i32_0 = arith.constant 0 : i32
    return %arg0, %c0_i32 : i32, i32
  }
}

</mosaic_0001>

<llo_original>
// kernel: tpu_custom_call.1
$region0: #{tpu_custom_call.1}
  #allocation0 [shape = 'u32[]', space=smem, size = 0x4, offset = 0x4, fixed_abs, tag = 'smem constant byte address 0x4 - core index']
  #allocation1 [shape = 'u32[144,128]{1,0:T(1,128)}', space=vmem, size = 0x12000, scoped, tag = 'internal scratch']
  %s0 = inlined_call_operand.vmem [shape: f32[1024,32], index: 0, kind: input, shape index: {}]
  %s1 = inlined_call_operand.vmem [shape: f32[1024,24], index: 1, kind: input, shape index: {}]
  %s2 = inlined_call_operand.vmem [shape: f32[32,24], index: 2, kind: input, shape index: {}]
  %s3 = inlined_call_operand.vmem [shape: f32[24,32], index: 3, kind: input, shape index: {}]
  %s4 = inlined_call_operand.vmem [shape: f32[1,32], index: 4, kind: input, shape index: {}]
  %s5 = inlined_call_operand.vmem [shape: f32[1024,32], index: 5, kind: output, shape index: {}]
  %s6 = sld [smem:[#allocation0]]
  $region53: #{tpu_custom_call.1} parent=0
    _
  %s8 = ssub.s32 1, %s6
  %s9 = scalar_select 0, %s8, %s6
  loop: start=0, step=1, limit=4
  $region2: #{tpu_custom_call.1} parent=0 // loop_pre_header
    _
  $region3: #{tpu_custom_call.1} parent=0 // loop_header
    %s11 = sphi 0, %s15
    %p12 = scmp.ge.s32.totalorder %s11, 4
    %s21 = sphi 0, %s23
    %s24 = sphi 0, %s21
    %s25 = sphi 0, %s24
    %s41 = sphi 0, %s25
    %s47 = sphi 0, %s49
    %s50 = sphi 0, %s47
    %s51 = sphi 0, %s50
    %s67 = sphi 0, %s51
    %s71 = sphi 0, %s71
    %s73 = sphi 0, %s71
    %s74 = sphi 0, %s73
    %s88 = sphi 0, %s74
    %s92 = sphi 0, %s92
    %s94 = sphi 0, %s92
    %s95 = sphi 0, %s94
    %s109 = sphi 0, %s95
    %s113 = sphi 0, %s113
    %s115 = sphi 0, %s113
    %s116 = sphi 0, %s115
    %s130 = sphi 0, %s116
    %s136 = sphi 0, %s138
    %s139 = sphi 0, %s136
    %s140 = sphi 0, %s139
    %s156 = sphi 0, %s140
  $region4: #{tpu_custom_call.1} parent=0 // loop_header_branch
    %14 = sbr.rel (%p12) target = $region8
  $region5: #{tpu_custom_call.1} parent=0 // loop_body
    %s16 = ssub.s32 %s11, 1
    %s17 = ssub.s32 %s11, 2
    %s18 = sadd.s32 %s11, 1
    %s19 = ssub.s32 %s11, %s18
    %p20 = scmp.eq.s32.totalorder %s19, 0
    %s22 = sadd.s32 %s21, 1
    %s23 = scalar_select %p20, %s21, %s22
    %p26 = pneg %p20
    %p27 = scmp.eq.s32.totalorder %s11, 1
    %p28 = por %p26, %p27
    %p29 = scmp.ne.s32.totalorder %s21, %s24
    %p30 = scmp.eq.s32.totalorder %s11, 0
    %p31 = por %p29, %p30
    %p32 = scmp.ne.s32.totalorder %s21, %s24
    %p33 = scmp.eq.s32.totalorder %s16, 1
    %p34 = por %p32, %p33
    %p35 = scmp.ne.s32.totalorder %s24, %s25
    %p36 = scmp.eq.s32.totalorder %s16, 0
    %p37 = por %p35, %p36
    %p38 = scmp.ne.s32.totalorder %s24, %s25
    %p39 = scmp.eq.s32.totalorder %s17, 1
    %p40 = por %p38, %p39
    %p42 = scmp.ne.s32.totalorder %s25, %s41
    %p43 = scmp.eq.s32.totalorder %s17, 0
    %p44 = por %p42, %p43
    %s45 = ssub.s32 %s11, %s18
    %p46 = scmp.eq.s32.totalorder %s45, 0
    %s48 = sadd.s32 %s47, 1
    %s49 = scalar_select %p46, %s47, %s48
    %p52 = pneg %p46
    %p53 = scmp.eq.s32.totalorder %s11, 1
    %p54 = por %p52, %p53
    %p55 = scmp.ne.s32.totalorder %s47, %s50
    %p56 = scmp.eq.s32.totalorder %s11, 0
    %p57 = por %p55, %p56
    %p58 = scmp.ne.s32.totalorder %s47, %s50
    %p59 = scmp.eq.s32.totalorder %s16, 1
    %p60 = por %p58, %p59
    %p61 = scmp.ne.s32.totalorder %s50, %s51
    %p62 = scmp.eq.s32.totalorder %s16, 0
    %p63 = por %p61, %p62
    %p64 = scmp.ne.s32.totalorder %s50, %s51
    %p65 = scmp.eq.s32.totalorder %s17, 1
    %p66 = por %p64, %p65
    %p68 = scmp.ne.s32.totalorder %s51, %s67
    %p69 = scmp.eq.s32.totalorder %s17, 0
    %p70 = por %p68, %p69
    %s72 = sadd.s32 %s71, 1
    %p75 = scmp.eq.s32.totalorder %s11, 1
    %p76 = scmp.ne.s32.totalorder %s71, %s73
    %p77 = scmp.eq.s32.totalorder %s11, 0
    %p78 = por %p76, %p77
    %p79 = scmp.ne.s32.totalorder %s71, %s73
    %p80 = scmp.eq.s32.totalorder %s16, 1
    %p81 = por %p79, %p80
    %p82 = scmp.ne.s32.totalorder %s73, %s74
    %p83 = scmp.eq.s32.totalorder %s16, 0
    %p84 = por %p82, %p83
    %p85 = scmp.ne.s32.totalorder %s73, %s74
    %p86 = scmp.eq.s32.totalorder %s17, 1
    %p87 = por %p85, %p86
    %p89 = scmp.ne.s32.totalorder %s74, %s88
    %p90 = scmp.eq.s32.totalorder %s17, 0
    %p91 = por %p89, %p90
    %s93 = sadd.s32 %s92, 1
    %p96 = scmp.eq.s32.totalorder %s11, 1
    %p97 = scmp.ne.s32.totalorder %s92, %s94
    %p98 = scmp.eq.s32.totalorder %s11, 0
    %p99 = por %p97, %p98
    %p100 = scmp.ne.s32.totalorder %s92, %s94
    %p101 = scmp.eq.s32.totalorder %s16, 1
    %p102 = por %p100, %p101
    %p103 = scmp.ne.s32.totalorder %s94, %s95
    %p104 = scmp.eq.s32.totalorder %s16, 0
    %p105 = por %p103, %p104
    %p106 = scmp.ne.s32.totalorder %s94, %s95
    %p107 = scmp.eq.s32.totalorder %s17, 1
    %p108 = por %p106, %p107
    %p110 = scmp.ne.s32.totalorder %s95, %s109
    %p111 = scmp.eq.s32.totalorder %s17, 0
    %p112 = por %p110, %p111
    %s114 = sadd.s32 %s113, 1
    %p117 = scmp.eq.s32.totalorder %s11, 1
    %p118 = scmp.ne.s32.totalorder %s113, %s115
    %p119 = scmp.eq.s32.totalorder %s11, 0
    %p120 = por %p118, %p119
    %p121 = scmp.ne.s32.totalorder %s113, %s115
    %p122 = scmp.eq.s32.totalorder %s16, 1
    %p123 = por %p121, %p122
    %p124 = scmp.ne.s32.totalorder %s115, %s116
    %p125 = scmp.eq.s32.totalorder %s16, 0
    %p126 = por %p124, %p125
    %p127 = scmp.ne.s32.totalorder %s115, %s116
    %p128 = scmp.eq.s32.totalorder %s17, 1
    %p129 = por %p127, %p128
    %p131 = scmp.ne.s32.totalorder %s116, %s130
    %p132 = scmp.eq.s32.totalorder %s17, 0
    %p133 = por %p131, %p132
    %s134 = ssub.s32 %s11, %s18
    %p135 = scmp.eq.s32.totalorder %s134, 0
    %s137 = sadd.s32 %s136, 1
    %s138 = scalar_select %p135, %s136, %s137
    %p141 = pneg %p135
    %p142 = scmp.eq.s32.totalorder %s11, 1
    %p143 = por %p141, %p142
    %p144 = scmp.ne.s32.totalorder %s136, %s139
    %p145 = scmp.eq.s32.totalorder %s11, 0
    %p146 = por %p144, %p145
    %p147 = scmp.ne.s32.totalorder %s136, %s139
    %p148 = scmp.eq.s32.totalorder %s16, 1
    %p149 = por %p147, %p148
    %p150 = scmp.ne.s32.totalorder %s139, %s140
    %p151 = scmp.eq.s32.totalorder %s16, 0
    %p152 = por %p150, %p151
    %p153 = scmp.ne.s32.totalorder %s139, %s140
    %p154 = scmp.eq.s32.totalorder %s17, 1
    %p155 = por %p153, %p154
    %p157 = scmp.ne.s32.totalorder %s140, %s156
    %p158 = scmp.eq.s32.totalorder %s17, 0
    %p159 = por %p157, %p158
    %p160 = scmp.le.s32.totalorder 1, %s11
    %p161 = scmp.lt.s32.totalorder %s11, 3
    %p162 = pnand %p160, %p161
    %p163 = pneg %p162
    // Predicated region
    $region9: #{tpu_custom_call.1} parent=5 // pred_check
      _
    $region10: #{tpu_custom_call.1} parent=5 // pred_check_branch
      %165 = sbr.rel (%p162) target = $region12
    $region11: #{tpu_custom_call.1} parent=5 // pred_region
      %s166 = ssub.s32 %s11, 1
      // Predicated region
      $region13: #{tpu_custom_call.1} parent=11 // pred_check
        %p167 = pneg %p84
      $region14: #{tpu_custom_call.1} parent=11 // pred_check_branch
        %169 = sbr.rel (%p167) target = $region16
      $region15: #{tpu_custom_call.1} parent=11 // pred_region
        _
      $region16: #{tpu_custom_call.1} parent=11 // pred_fallthru
        _
      // Predicated region
      $region17: #{tpu_custom_call.1} parent=11 // pred_check
        %p170 = pneg %p105
      $region18: #{tpu_custom_call.1} parent=11 // pred_check_branch
        %172 = sbr.rel (%p170) target = $region20
      $region19: #{tpu_custom_call.1} parent=11 // pred_region
        _
      $region20: #{tpu_custom_call.1} parent=11 // pred_fallthru
        _
      // Predicated region
      $region21: #{tpu_custom_call.1} parent=11 // pred_check
        %p173 = pneg %p126
      $region22: #{tpu_custom_call.1} parent=11 // pred_check_branch
        %175 = sbr.rel (%p173) target = $region24
      $region23: #{tpu_custom_call.1} parent=11 // pred_region
        _
      $region24: #{tpu_custom_call.1} parent=11 // pred_fallthru
        _
    $region12: #{tpu_custom_call.1} parent=5 // pred_fallthru
      _
    %p176 = scmp.lt.s32.totalorder %s11, 2
    // Predicated region
    $region25: #{tpu_custom_call.1} parent=5 // pred_check
      %p177 = pneg %p176
    $region26: #{tpu_custom_call.1} parent=5 // pred_check_branch
      %179 = sbr.rel (%p177) target = $region28
    $region27: #{tpu_custom_call.1} parent=5 // pred_region
      // Predicated region
      $region29: #{tpu_custom_call.1} parent=27 // pred_check
        %p180 = pneg %p31
      $region30: #{tpu_custom_call.1} parent=27 // pred_check_branch
        %182 = sbr.rel (%p180) target = $region32
      $region31: #{tpu_custom_call.1} parent=27 // pred_region
        %s183 = smul.u32 64, %s11
        %p184 = scmp.lt.s32.totalorder %s183, 127
        %s185 = scalar_select %p184, %s183, 127
        %s186 = smul.addr %s185, 8
        %s187 = scalar_lea.vmem %s0, %s186
        %s188 = smul.u32 64, %s11
      $region32: #{tpu_custom_call.1} parent=27 // pred_fallthru
        _
      // Predicated region
      $region33: #{tpu_custom_call.1} parent=27 // pred_check
        %p189 = pneg %p57
      $region34: #{tpu_custom_call.1} parent=27 // pred_check_branch
        %191 = sbr.rel (%p189) target = $region36
      $region35: #{tpu_custom_call.1} parent=27 // pred_region
        %s192 = smul.u32 64, %s11
        %p193 = scmp.lt.s32.totalorder %s192, 127
        %s194 = scalar_select %p193, %s192, 127
        %s195 = smul.addr %s194, 8
        %s196 = scalar_lea.vmem %s1, %s195
        %s197 = smul.u32 64, %s11
      $region36: #{tpu_custom_call.1} parent=27 // pred_fallthru
        _
    $region28: #{tpu_custom_call.1} parent=5 // pred_fallthru
      _
    %p198 = scmp.le.s32.totalorder 1, %s11
    %p199 = scmp.lt.s32.totalorder %s11, 3
    %p200 = pnand %p198, %p199
    %p201 = pneg %p200
    // Predicated region
    $region37: #{tpu_custom_call.1} parent=5 // pred_check
      _
    $region38: #{tpu_custom_call.1} parent=5 // pred_check_branch
      %203 = sbr.rel (%p200) target = $region40
    $region39: #{tpu_custom_call.1} parent=5 // pred_region
      %s204 = ssub.s32 %s11, 1
      %s205 = smul.u32 64, %s16
      %p206 = scmp.lt.s32.totalorder %s205, 127
      %s207 = scalar_select %p206, %s205, 127
      %s208 = smul.addr %s207, 8
      %s209 = scalar_lea.vmem %s0, %s208
      %p210 = pneg %p37
      %p211 = pneg %p34
      %s212 = smul.u32 64, %s16
      %p213 = scmp.lt.s32.totalorder %s212, 127
      %s214 = scalar_select %p213, %s212, 127
      %s215 = smul.addr %s214, 8
      %s216 = scalar_lea.vmem %s1, %s215
      %p217 = pneg %p63
      %p218 = pneg %p60
      %p219 = pneg %p84
      %p220 = pneg %p81
      %p221 = pneg %p105
      %p222 = pneg %p102
      %p223 = pneg %p126
      %p224 = pneg %p123
      %p225 = pneg %p152
      %p226 = pneg %p149
      %s227 = smul.u32 64, %s16
      %p228 = scmp.lt.s32.totalorder %s227, 127
      %s229 = scalar_select %p228, %s227, 127
      %s230 = smul.addr %s229, 8
      %s231 = scalar_lea.vmem %s5, %s230
      %s232 = smul.u32 64, %s16
      %p233 = scmp.lt.s32.totalorder %s232, 127
      %s234 = scalar_select %p233, %s232, 127
      %s235 = smul.addr %s234, 8
      %s236 = scalar_lea.vmem %s0, %s235
      %s237 = smul.u32 64, %s16
      %s238 = smul.u32 64, %s16
      %p239 = scmp.lt.s32.totalorder %s238, 127
      %s240 = scalar_select %p239, %s238, 127
      %s241 = smul.addr %s240, 8
      %s242 = scalar_lea.vmem %s1, %s241
      %s243 = smul.u32 64, %s16
      %s244 = smul.u32 64, %s16
      %p245 = scmp.lt.s32.totalorder %s244, 127
      %s246 = scalar_select %p245, %s244, 127
      %s247 = smul.addr %s246, 8
      %s248 = scalar_lea.vmem %s5, %s247
      %s249 = smul.u32 64, %s16
      %v250 = vld [vmem:[%s236] sm:$0xff]
      %v251 = vld [vmem:[%s236 + $0x8] sm:$0xff]
      %v252 = vld [vmem:[%s236 + $0x10] sm:$0xff]
      %v253 = vld [vmem:[%s236 + $0x18] sm:$0xff]
      %v254 = vld [vmem:[%s236 + $0x20] sm:$0xff]
      %v255 = vld [vmem:[%s236 + $0x28] sm:$0xff]
      %v256 = vld [vmem:[%s236 + $0x30] sm:$0xff]
      %v257 = vld [vmem:[%s236 + $0x38] sm:$0xff]
      %v258 = vld [vmem:[%s236 + $0x40] sm:$0xff]
      %v259 = vld [vmem:[%s236 + $0x48] sm:$0xff]
      %v260 = vld [vmem:[%s236 + $0x50] sm:$0xff]
      %v261 = vld [vmem:[%s236 + $0x58] sm:$0xff]
      %v262 = vld [vmem:[%s236 + $0x60] sm:$0xff]
      %v263 = vld [vmem:[%s236 + $0x68] sm:$0xff]
      %v264 = vld [vmem:[%s236 + $0x70] sm:$0xff]
      %v265 = vld [vmem:[%s236 + $0x78] sm:$0xff]
      %v266 = vld [vmem:[%s236 + $0x80] sm:$0xff]
      %v267 = vld [vmem:[%s236 + $0x88] sm:$0xff]
      %v268 = vld [vmem:[%s236 + $0x90] sm:$0xff]
      %v269 = vld [vmem:[%s236 + $0x98] sm:$0xff]
      %v270 = vld [vmem:[%s236 + $0xa0] sm:$0xff]
      %v271 = vld [vmem:[%s236 + $0xa8] sm:$0xff]
      %v272 = vld [vmem:[%s236 + $0xb0] sm:$0xff]
      %v273 = vld [vmem:[%s236 + $0xb8] sm:$0xff]
      %v274 = vld [vmem:[%s236 + $0xc0] sm:$0xff]
      %v275 = vld [vmem:[%s236 + $0xc8] sm:$0xff]
      %v276 = vld [vmem:[%s236 + $0xd0] sm:$0xff]
      %v277 = vld [vmem:[%s236 + $0xd8] sm:$0xff]
      %v278 = vld [vmem:[%s236 + $0xe0] sm:$0xff]
      %v279 = vld [vmem:[%s236 + $0xe8] sm:$0xff]
      %v280 = vld [vmem:[%s236 + $0xf0] sm:$0xff]
      %v281 = vld [vmem:[%s236 + $0xf8] sm:$0xff]
      %v282 = vld [vmem:[%s236 + $0x100] sm:$0xff]
      %v283 = vld [vmem:[%s236 + $0x108] sm:$0xff]
      %v284 = vld [vmem:[%s236 + $0x110] sm:$0xff]
      %v285 = vld [vmem:[%s236 + $0x118] sm:$0xff]
      %v286 = vld [vmem:[%s236 + $0x120] sm:$0xff]
      %v287 = vld [vmem:[%s236 + $0x128] sm:$0xff]
      %v288 = vld [vmem:[%s236 + $0x130] sm:$0xff]
      %v289 = vld [vmem:[%s236 + $0x138] sm:$0xff]
      %v290 = vld [vmem:[%s236 + $0x140] sm:$0xff]
      %v291 = vld [vmem:[%s236 + $0x148] sm:$0xff]
      %v292 = vld [vmem:[%s236 + $0x150] sm:$0xff]
      %v293 = vld [vmem:[%s236 + $0x158] sm:$0xff]
      %v294 = vld [vmem:[%s236 + $0x160] sm:$0xff]
      %v295 = vld [vmem:[%s236 + $0x168] sm:$0xff]
      %v296 = vld [vmem:[%s236 + $0x170] sm:$0xff]
      %v297 = vld [vmem:[%s236 + $0x178] sm:$0xff]
      %v298 = vld [vmem:[%s236 + $0x180] sm:$0xff]
      %v299 = vld [vmem:[%s236 + $0x188] sm:$0xff]
      %v300 = vld [vmem:[%s236 + $0x190] sm:$0xff]
      %v301 = vld [vmem:[%s236 + $0x198] sm:$0xff]
      %v302 = vld [vmem:[%s236 + $0x1a0] sm:$0xff]
      %v303 = vld [vmem:[%s236 + $0x1a8] sm:$0xff]
      %v304 = vld [vmem:[%s236 + $0x1b0] sm:$0xff]
      %v305 = vld [vmem:[%s236 + $0x1b8] sm:$0xff]
      %v306 = vld [vmem:[%s236 + $0x1c0] sm:$0xff]
      %v307 = vld [vmem:[%s236 + $0x1c8] sm:$0xff]
      %v308 = vld [vmem:[%s236 + $0x1d0] sm:$0xff]
      %v309 = vld [vmem:[%s236 + $0x1d8] sm:$0xff]
      %v310 = vld [vmem:[%s236 + $0x1e0] sm:$0xff]
      %v311 = vld [vmem:[%s236 + $0x1e8] sm:$0xff]
      %v312 = vld [vmem:[%s236 + $0x1f0] sm:$0xff]
      %v313 = vld [vmem:[%s236 + $0x1f8] sm:$0xff]
      %v314 = vld [vmem:[%s2] sm:$0xff]
      %v315 = vld [vmem:[%s2 + $0x8] sm:$0xff]
      %v316 = vld [vmem:[%s2 + $0x10] sm:$0xff]
      %v317 = vld [vmem:[%s2 + $0x18] sm:$0xff]
      %vm318 = vcmask 261120
      %v320 = vsel %vm318, %v250, 0
      %v323 = vsel %vm318, %v251, 0
      %v326 = vsel %vm318, %v252, 0
      %v329 = vsel %vm318, %v253, 0
      %v332 = vsel %vm318, %v254, 0
      %v335 = vsel %vm318, %v255, 0
      %v338 = vsel %vm318, %v256, 0
      %v341 = vsel %vm318, %v257, 0
      %v344 = vsel %vm318, %v258, 0
      %v347 = vsel %vm318, %v259, 0
      %v350 = vsel %vm318, %v260, 0
      %v353 = vsel %vm318, %v261, 0
      %v356 = vsel %vm318, %v262, 0
      %v359 = vsel %vm318, %v263, 0
      %v362 = vsel %vm318, %v264, 0
      %v365 = vsel %vm318, %v265, 0
      %v368 = vsel %vm318, %v266, 0
      %v371 = vsel %vm318, %v267, 0
      %v374 = vsel %vm318, %v268, 0
      %v377 = vsel %vm318, %v269, 0
      %v380 = vsel %vm318, %v270, 0
      %v383 = vsel %vm318, %v271, 0
      %v386 = vsel %vm318, %v272, 0
      %v389 = vsel %vm318, %v273, 0
      %v392 = vsel %vm318, %v274, 0
      %v395 = vsel %vm318, %v275, 0
      %v398 = vsel %vm318, %v276, 0
      %v401 = vsel %vm318, %v277, 0
      %v404 = vsel %vm318, %v278, 0
      %v407 = vsel %vm318, %v279, 0
      %v410 = vsel %vm318, %v280, 0
      %v413 = vsel %vm318, %v281, 0
      %v416 = vsel %vm318, %v282, 0
      %v419 = vsel %vm318, %v283, 0
      %v422 = vsel %vm318, %v284, 0
      %v425 = vsel %vm318, %v285, 0
      %v428 = vsel %vm318, %v286, 0
      %v431 = vsel %vm318, %v287, 0
      %v434 = vsel %vm318, %v288, 0
      %v437 = vsel %vm318, %v289, 0
      %v440 = vsel %vm318, %v290, 0
      %v443 = vsel %vm318, %v291, 0
      %v446 = vsel %vm318, %v292, 0
      %v449 = vsel %vm318, %v293, 0
      %v452 = vsel %vm318, %v294, 0
      %v455 = vsel %vm318, %v295, 0
      %v458 = vsel %vm318, %v296, 0
      %v461 = vsel %vm318, %v297, 0
      %v464 = vsel %vm318, %v298, 0
      %v467 = vsel %vm318, %v299, 0
      %v470 = vsel %vm318, %v300, 0
      %v473 = vsel %vm318, %v301, 0
      %v476 = vsel %vm318, %v302, 0
      %v479 = vsel %vm318, %v303, 0
      %v482 = vsel %vm318, %v304, 0
      %v485 = vsel %vm318, %v305, 0
      %v488 = vsel %vm318, %v306, 0
      %v491 = vsel %vm318, %v307, 0
      %v494 = vsel %vm318, %v308, 0
      %v497 = vsel %vm318, %v309, 0
      %v500 = vsel %vm318, %v310, 0
      %v503 = vsel %vm318, %v311, 0
      %v506 = vsel %vm318, %v312, 0
      %v509 = vsel %vm318, %v313, 0
      %511 = vmatprep.subr.mxu0 0.0
      %512 = vmatpush1.msra.mxu0 %v314
      %513 = vmatprep.subr.mxu0 0.0
      %514 = vmatpush1.msra.mxu0 %v315
      %515 = vmatprep.subr.mxu0 0.0
      %516 = vmatpush1.msra.mxu0 %v316
      %517 = vmatprep.subr.mxu0 0.0
      %518 = vmatpush1.msra.mxu0 %v317
      %519 = vmatprep.subr.mxu0 0.0
      %520 = vmatpush1.msra.mxu0 0.0
      %521 = vmatprep.subr.mxu0 0.0
      %522 = vmatpush1.msra.mxu0 0.0
      %523 = vmatprep.subr.mxu0 0.0
      %524 = vmatpush1.msra.mxu0 0.0
      %525 = vmatprep.subr.mxu0 0.0
      %526 = vmatpush1.msra.mxu0 0.0
      %527 = vmatprep.subr.mxu0 0.0
      %528 = vmatpush1.msra.mxu0 0.0
      %529 = vmatprep.subr.mxu0 0.0
      %530 = vmatpush1.msra.mxu0 0.0
      %531 = vmatprep.subr.mxu0 0.0
      %532 = vmatpush1.msra.mxu0 0.0
      %533 = vmatprep.subr.mxu0 0.0
      %534 = vmatpush1.msra.mxu0 0.0
      %535 = vmatprep.subr.mxu0 0.0
      %536 = vmatpush1.msra.mxu0 0.0
      %537 = vmatprep.subr.mxu0 0.0
      %538 = vmatpush1.msra.mxu0 0.0
      %539 = vmatprep.subr.mxu0 0.0
      %540 = vmatpush1.msra.mxu0 0.0
      %541 = vmatprep.subr.mxu0 0.0
      %542 = vmatpush1.msra.mxu0 0.0
      %543 = vmatprep.subr.mxu0 0.0
      %544 = vmatpush1.msra.mxu0 0.0
      %545 = vmatprep.subr.mxu0 0.0
      %546 = vmatpush1.msra.mxu0 0.0
      %547 = vmatprep.subr.mxu0 0.0
      %548 = vmatpush1.msra.mxu0 0.0
      %549 = vmatprep.subr.mxu0 0.0
      %550 = vmatpush1.msra.mxu0 0.0
      %551 = vmatprep.subr.mxu0 0.0
      %552 = vmatpush1.msra.mxu0 0.0
      %553 = vmatprep.subr.mxu0 0.0
      %554 = vmatpush1.msra.mxu0 0.0
      %555 = vmatprep.subr.mxu0 0.0
      %556 = vmatpush1.msra.mxu0 0.0
      %557 = vmatprep.subr.mxu0 0.0
      %558 = vmatpush1.msra.mxu0 0.0
      %559 = vmatprep.subr.mxu0 0.0
      %560 = vmatpush1.msra.mxu0 0.0
      %561 = vmatprep.subr.mxu0 0.0
      %562 = vmatpush1.msra.mxu0 0.0
      %563 = vmatprep.subr.mxu0 0.0
      %564 = vmatpush1.msra.mxu0 0.0
      %565 = vmatprep.subr.mxu0 0.0
      %566 = vmatpush1.msra.mxu0 0.0
      %567 = vmatprep.subr.mxu0 0.0
      %568 = vmatpush1.msra.mxu0 0.0
      %569 = vmatprep.subr.mxu0 0.0
      %570 = vmatpush1.msra.mxu0 0.0
      %571 = vmatprep.subr.mxu0 0.0
      %572 = vmatpush1.msra.mxu0 0.0
      %573 = vmatprep.subr.mxu0 0.0
      %574 = vmatpush1.msra.mxu0 0.0
      %575 = vmatprep.mubr.f32.mxu0 0.0
      %576 = vmatmul.mubr.f32.gmra.mrb[0].mxu0 %v320
      %v577 = vpop.f32.mrb[0].mxu0
      %v578 = vadd.f32 0.0, %v577
      %v579 = vpop.f32.mrb[0].mxu0
      %580 = vmatprep.mubr.f32.mxu0 0.0
      %581 = vmatmul.mubr.f32.gmra.mrb[0].mxu0 %v323
      %v582 = vpop.f32.mrb[0].mxu0
      %v583 = vadd.f32 0.0, %v582
      %v584 = vpop.f32.mrb[0].mxu0
      %585 = vmatprep.mubr.f32.mxu0 0.0
      %586 = vmatmul.mubr.f32.gmra.mrb[0].mxu0 %v326
      %v587 = vpop.f32.mrb[0].mxu0
      %v588 = vadd.f32 0.0, %v587
      %v589 = vpop.f32.mrb[0].mxu0
      %590 = vmatprep.mubr.f32.mxu0 0.0
      %591 = vmatmul.mubr.f32.gmra.mrb[0].mxu0 %v329
      %v592 = vpop.f32.mrb[0].mxu0
      %v593 = vadd.f32 0.0, %v592
      %v594 = vpop.f32.mrb[0].mxu0
      %595 = vmatprep.mubr.f32.mxu0 0.0
      %596 = vmatmul.mubr.f32.gmra.mrb[0].mxu0 %v332
      %v597 = vpop.f32.mrb[0].mxu0
      %v598 = vadd.f32 0.0, %v597
      %v599 = vpop.f32.mrb[0].mxu0
      %600 = vmatprep.mubr.f32.mxu0 0.0
      %601 = vmatmul.mubr.f32.gmra.mrb[0].mxu0 %v335
      %v602 = vpop.f32.mrb[0].mxu0
      %v603 = vadd.f32 0.0, %v602
      %v604 = vpop.f32.mrb[0].mxu0
      %605 = vmatprep.mubr.f32.mxu0 0.0
      %606 = vmatmul.mubr.f32.gmra.mrb[0].mxu0 %v338
      %v607 = vpop.f32.mrb[0].mxu0
      %v608 = vadd.f32 0.0, %v607
      %v609 = vpop.f32.mrb[0].mxu0
      %610 = vmatprep.mubr.f32.mxu0 0.0
      %611 = vmatmul.mubr.f32.gmra.mrb[0].mxu0 %v341
      %v612 = vpop.f32.mrb[0].mxu0
      %v613 = vadd.f32 0.0, %v612
      %v614 = vpop.f32.mrb[0].mxu0
      %615 = vmatprep.mubr.f32.mxu0 0.0
      %616 = vmatmul.mubr.f32.gmra.mrb[0].mxu0 %v344
      %v617 = vpop.f32.mrb[0].mxu0
      %v618 = vadd.f32 0.0, %v617
      %v619 = vpop.f32.mrb[0].mxu0
      %620 = vmatprep.mubr.f32.mxu0 0.0
      %621 = vmatmul.mubr.f32.gmra.mrb[0].mxu0 %v347
      %v622 = vpop.f32.mrb[0].mxu0
      %v623 = vadd.f32 0.0, %v622
      %v624 = vpop.f32.mrb[0].mxu0
      %625 = vmatprep.mubr.f32.mxu0 0.0
      %626 = vmatmul.mubr.f32.gmra.mrb[0].mxu0 %v350
      %v627 = vpop.f32.mrb[0].mxu0
      %v628 = vadd.f32 0.0, %v627
      %v629 = vpop.f32.mrb[0].mxu0
      %630 = vmatprep.mubr.f32.mxu0 0.0
      %631 = vmatmul.mubr.f32.gmra.mrb[0].mxu0 %v353
      %v632 = vpop.f32.mrb[0].mxu0
      %v633 = vadd.f32 0.0, %v632
      %v634 = vpop.f32.mrb[0].mxu0
      %635 = vmatprep.mubr.f32.mxu0 0.0
      %636 = vmatmul.mubr.f32.gmra.mrb[0].mxu0 %v356
      %v637 = vpop.f32.mrb[0].mxu0
      %v638 = vadd.f32 0.0, %v637
      %v639 = vpop.f32.mrb[0].mxu0
      %640 = vmatprep.mubr.f32.mxu0 0.0
      %641 = vmatmul.mubr.f32.gmra.mrb[0].mxu0 %v359
      %v642 = vpop.f32.mrb[0].mxu0
      %v643 = vadd.f32 0.0, %v642
      %v644 = vpop.f32.mrb[0].mxu0
      %645 = vmatprep.mubr.f32.mxu0 0.0
      %646 = vmatmul.mubr.f32.gmra.mrb[0].mxu0 %v362
      %v647 = vpop.f32.mrb[0].mxu0
      %v648 = vadd.f32 0.0, %v647
      %v649 = vpop.f32.mrb[0].mxu0
      %650 = vmatprep.mubr.f32.mxu0 0.0
      %651 = vmatmul.mubr.f32.gmra.mrb[0].mxu0 %v365
      %v652 = vpop.f32.mrb[0].mxu0
      %v653 = vadd.f32 0.0, %v652
      %v654 = vpop.f32.mrb[0].mxu0
      %655 = vmatprep.mubr.f32.mxu0 0.0
      %656 = vmatmul.mubr.f32.gmra.mrb[0].mxu0 %v368
      %v657 = vpop.f32.mrb[0].mxu0
      %v658 = vadd.f32 0.0, %v657
      %v659 = vpop.f32.mrb[0].mxu0
      %660 = vmatprep.mubr.f32.mxu0 0.0
      %661 = vmatmul.mubr.f32.gmra.mrb[0].mxu0 %v371
      %v662 = vpop.f32.mrb[0].mxu0
      %v663 = vadd.f32 0.0, %v662
      %v664 = vpop.f32.mrb[0].mxu0
      %665 = vmatprep.mubr.f32.mxu0 0.0
      %666 = vmatmul.mubr.f32.gmra.mrb[0].mxu0 %v374
      %v667 = vpop.f32.mrb[0].mxu0
      %v668 = vadd.f32 0.0, %v667
      %v669 = vpop.f32.mrb[0].mxu0
      %670 = vmatprep.mubr.f32.mxu0 0.0
      %671 = vmatmul.mubr.f32.gmra.mrb[0].mxu0 %v377
      %v672 = vpop.f32.mrb[0].mxu0
      %v673 = vadd.f32 0.0, %v672
      %v674 = vpop.f32.mrb[0].mxu0
      %675 = vmatprep.mubr.f32.mxu0 0.0
      %676 = vmatmul.mubr.f32.gmra.mrb[0].mxu0 %v380
      %v677 = vpop.f32.mrb[0].mxu0
      %v678 = vadd.f32 0.0, %v677
      %v679 = vpop.f32.mrb[0].mxu0
      %680 = vmatprep.mubr.f32.mxu0 0.0
      %681 = vmatmul.mubr.f32.gmra.mrb[0].mxu0 %v383
      %v682 = vpop.f32.mrb[0].mxu0
      %v683 = vadd.f32 0.0, %v682
      %v684 = vpop.f32.mrb[0].mxu0
      %685 = vmatprep.mubr.f32.mxu0 0.0
      %686 = vmatmul.mubr.f32.gmra.mrb[0].mxu0 %v386
      %v687 = vpop.f32.mrb[0].mxu0
      %v688 = vadd.f32 0.0, %v687
      %v689 = vpop.f32.mrb[0].mxu0
      %690 = vmatprep.mubr.f32.mxu0 0.0
      %691 = vmatmul.mubr.f32.gmra.mrb[0].mxu0 %v389
      %v692 = vpop.f32.mrb[0].mxu0
      %v693 = vadd.f32 0.0, %v692
      %v694 = vpop.f32.mrb[0].mxu0
      %695 = vmatprep.mubr.f32.mxu0 0.0
      %696 = vmatmul.mubr.f32.gmra.mrb[0].mxu0 %v392
      %v697 = vpop.f32.mrb[0].mxu0
      %v698 = vadd.f32 0.0, %v697
      %v699 = vpop.f32.mrb[0].mxu0
      %700 = vmatprep.mubr.f32.mxu0 0.0
      %701 = vmatmul.mubr.f32.gmra.mrb[0].mxu0 %v395
      %v702 = vpop.f32.mrb[0].mxu0
      %v703 = vadd.f32 0.0, %v702
      %v704 = vpop.f32.mrb[0].mxu0
      %705 = vmatprep.mubr.f32.mxu0 0.0
      %706 = vmatmul.mubr.f32.gmra.mrb[0].mxu0 %v398
      %v707 = vpop.f32.mrb[0].mxu0
      %v708 = vadd.f32 0.0, %v707
      %v709 = vpop.f32.mrb[0].mxu0
      %710 = vmatprep.mubr.f32.mxu0 0.0
      %711 = vmatmul.mubr.f32.gmra.mrb[0].mxu0 %v401
      %v712 = vpop.f32.mrb[0].mxu0
      %v713 = vadd.f32 0.0, %v712
      %v714 = vpop.f32.mrb[0].mxu0
      %715 = vmatprep.mubr.f32.mxu0 0.0
      %716 = vmatmul.mubr.f32.gmra.mrb[0].mxu0 %v404
      %v717 = vpop.f32.mrb[0].mxu0
      %v718 = vadd.f32 0.0, %v717
      %v719 = vpop.f32.mrb[0].mxu0
      %720 = vmatprep.mubr.f32.mxu0 0.0
      %721 = vmatmul.mubr.f32.gmra.mrb[0].mxu0 %v407
      %v722 = vpop.f32.mrb[0].mxu0
      %v723 = vadd.f32 0.0, %v722
      %v724 = vpop.f32.mrb[0].mxu0
      %725 = vmatprep.mubr.f32.mxu0 0.0
      %726 = vmatmul.mubr.f32.gmra.mrb[0].mxu0 %v410
      %v727 = vpop.f32.mrb[0].mxu0
      %v728 = vadd.f32 0.0, %v727
      %v729 = vpop.f32.mrb[0].mxu0
      %730 = vmatprep.mubr.f32.mxu0 0.0
      %731 = vmatmul.mubr.f32.gmra.mrb[0].mxu0 %v413
      %v732 = vpop.f32.mrb[0].mxu0
      %v733 = vadd.f32 0.0, %v732
      %v734 = vpop.f32.mrb[0].mxu0
      %735 = vmatprep.mubr.f32.mxu0 0.0
      %736 = vmatmul.mubr.f32.gmra.mrb[0].mxu0 %v416
      %v737 = vpop.f32.mrb[0].mxu0
      %v738 = vadd.f32 0.0, %v737
      %v739 = vpop.f32.mrb[0].mxu0
      %740 = vmatprep.mubr.f32.mxu0 0.0
      %741 = vmatmul.mubr.f32.gmra.mrb[0].mxu0 %v419
      %v742 = vpop.f32.mrb[0].mxu0
      %v743 = vadd.f32 0.0, %v742
      %v744 = vpop.f32.mrb[0].mxu0
      %745 = vmatprep.mubr.f32.mxu0 0.0
      %746 = vmatmul.mubr.f32.gmra.mrb[0].mxu0 %v422
      %v747 = vpop.f32.mrb[0].mxu0
      %v748 = vadd.f32 0.0, %v747
      %v749 = vpop.f32.mrb[0].mxu0
      %750 = vmatprep.mubr.f32.mxu0 0.0
      %751 = vmatmul.mubr.f32.gmra.mrb[0].mxu0 %v425
      %v752 = vpop.f32.mrb[0].mxu0
      %v753 = vadd.f32 0.0, %v752
      %v754 = vpop.f32.mrb[0].mxu0
      %755 = vmatprep.mubr.f32.mxu0 0.0
      %756 = vmatmul.mubr.f32.gmra.mrb[0].mxu0 %v428
      %v757 = vpop.f32.mrb[0].mxu0
      %v758 = vadd.f32 0.0, %v757
      %v759 = vpop.f32.mrb[0].mxu0
      %760 = vmatprep.mubr.f32.mxu0 0.0
      %761 = vmatmul.mubr.f32.gmra.mrb[0].mxu0 %v431
      %v762 = vpop.f32.mrb[0].mxu0
      %v763 = vadd.f32 0.0, %v762
      %v764 = vpop.f32.mrb[0].mxu0
      %765 = vmatprep.mubr.f32.mxu0 0.0
      %766 = vmatmul.mubr.f32.gmra.mrb[0].mxu0 %v434
      %v767 = vpop.f32.mrb[0].mxu0
      %v768 = vadd.f32 0.0, %v767
      %v769 = vpop.f32.mrb[0].mxu0
      %770 = vmatprep.mubr.f32.mxu0 0.0
      %771 = vmatmul.mubr.f32.gmra.mrb[0].mxu0 %v437
      %v772 = vpop.f32.mrb[0].mxu0
      %v773 = vadd.f32 0.0, %v772
      %v774 = vpop.f32.mrb[0].mxu0
      %775 = vmatprep.mubr.f32.mxu0 0.0
      %776 = vmatmul.mubr.f32.gmra.mrb[0].mxu0 %v440
      %v777 = vpop.f32.mrb[0].mxu0
      %v778 = vadd.f32 0.0, %v777
      %v779 = vpop.f32.mrb[0].mxu0
      %780 = vmatprep.mubr.f32.mxu0 0.0
      %781 = vmatmul.mubr.f32.gmra.mrb[0].mxu0 %v443
      %v782 = vpop.f32.mrb[0].mxu0
      %v783 = vadd.f32 0.0, %v782
      %v784 = vpop.f32.mrb[0].mxu0
      %785 = vmatprep.mubr.f32.mxu0 0.0
      %786 = vmatmul.mubr.f32.gmra.mrb[0].mxu0 %v446
      %v787 = vpop.f32.mrb[0].mxu0
      %v788 = vadd.f32 0.0, %v787
      %v789 = vpop.f32.mrb[0].mxu0
      %790 = vmatprep.mubr.f32.mxu0 0.0
      %791 = vmatmul.mubr.f32.gmra.mrb[0].mxu0 %v449
      %v792 = vpop.f32.mrb[0].mxu0
      %v793 = vadd.f32 0.0, %v792
      %v794 = vpop.f32.mrb[0].mxu0
      %795 = vmatprep.mubr.f32.mxu0 0.0
      %796 = vmatmul.mubr.f32.gmra.mrb[0].mxu0 %v452
      %v797 = vpop.f32.mrb[0].mxu0
      %v798 = vadd.f32 0.0, %v797
      %v799 = vpop.f32.mrb[0].mxu0
      %800 = vmatprep.mubr.f32.mxu0 0.0
      %801 = vmatmul.mubr.f32.gmra.mrb[0].mxu0 %v455
      %v802 = vpop.f32.mrb[0].mxu0
      %v803 = vadd.f32 0.0, %v802
      %v804 = vpop.f32.mrb[0].mxu0
      %805 = vmatprep.mubr.f32.mxu0 0.0
      %806 = vmatmul.mubr.f32.gmra.mrb[0].mxu0 %v458
      %v807 = vpop.f32.mrb[0].mxu0
      %v808 = vadd.f32 0.0, %v807
      %v809 = vpop.f32.mrb[0].mxu0
      %810 = vmatprep.mubr.f32.mxu0 0.0
      %811 = vmatmul.mubr.f32.gmra.mrb[0].mxu0 %v461
      %v812 = vpop.f32.mrb[0].mxu0
      %v813 = vadd.f32 0.0, %v812
      %v814 = vpop.f32.mrb[0].mxu0
      %815 = vmatprep.mubr.f32.mxu0 0.0
      %816 = vmatmul.mubr.f32.gmra.mrb[0].mxu0 %v464
      %v817 = vpop.f32.mrb[0].mxu0
      %v818 = vadd.f32 0.0, %v817
      %v819 = vpop.f32.mrb[0].mxu0
      %820 = vmatprep.mubr.f32.mxu0 0.0
      %821 = vmatmul.mubr.f32.gmra.mrb[0].mxu0 %v467
      %v822 = vpop.f32.mrb[0].mxu0
      %v823 = vadd.f32 0.0, %v822
      %v824 = vpop.f32.mrb[0].mxu0
      %825 = vmatprep.mubr.f32.mxu0 0.0
      %826 = vmatmul.mubr.f32.gmra.mrb[0].mxu0 %v470
      %v827 = vpop.f32.mrb[0].mxu0
      %v828 = vadd.f32 0.0, %v827
      %v829 = vpop.f32.mrb[0].mxu0
      %830 = vmatprep.mubr.f32.mxu0 0.0
      %831 = vmatmul.mubr.f32.gmra.mrb[0].mxu0 %v473
      %v832 = vpop.f32.mrb[0].mxu0
      %v833 = vadd.f32 0.0, %v832
      %v834 = vpop.f32.mrb[0].mxu0
      %835 = vmatprep.mubr.f32.mxu0 0.0
      %836 = vmatmul.mubr.f32.gmra.mrb[0].mxu0 %v476
      %v837 = vpop.f32.mrb[0].mxu0
      %v838 = vadd.f32 0.0, %v837
      %v839 = vpop.f32.mrb[0].mxu0
      %840 = vmatprep.mubr.f32.mxu0 0.0
      %841 = vmatmul.mubr.f32.gmra.mrb[0].mxu0 %v479
      %v842 = vpop.f32.mrb[0].mxu0
      %v843 = vadd.f32 0.0, %v842
      %v844 = vpop.f32.mrb[0].mxu0
      %845 = vmatprep.mubr.f32.mxu0 0.0
      %846 = vmatmul.mubr.f32.gmra.mrb[0].mxu0 %v482
      %v847 = vpop.f32.mrb[0].mxu0
      %v848 = vadd.f32 0.0, %v847
      %v849 = vpop.f32.mrb[0].mxu0
      %850 = vmatprep.mubr.f32.mxu0 0.0
      %851 = vmatmul.mubr.f32.gmra.mrb[0].mxu0 %v485
      %v852 = vpop.f32.mrb[0].mxu0
      %v853 = vadd.f32 0.0, %v852
      %v854 = vpop.f32.mrb[0].mxu0
      %855 = vmatprep.mubr.f32.mxu0 0.0
      %856 = vmatmul.mubr.f32.gmra.mrb[0].mxu0 %v488
      %v857 = vpop.f32.mrb[0].mxu0
      %v858 = vadd.f32 0.0, %v857
      %v859 = vpop.f32.mrb[0].mxu0
      %860 = vmatprep.mubr.f32.mxu0 0.0
      %861 = vmatmul.mubr.f32.gmra.mrb[0].mxu0 %v491
      %v862 = vpop.f32.mrb[0].mxu0
      %v863 = vadd.f32 0.0, %v862
      %v864 = vpop.f32.mrb[0].mxu0
      %865 = vmatprep.mubr.f32.mxu0 0.0
      %866 = vmatmul.mubr.f32.gmra.mrb[0].mxu0 %v494
      %v867 = vpop.f32.mrb[0].mxu0
      %v868 = vadd.f32 0.0, %v867
      %v869 = vpop.f32.mrb[0].mxu0
      %870 = vmatprep.mubr.f32.mxu0 0.0
      %871 = vmatmul.mubr.f32.gmra.mrb[0].mxu0 %v497
      %v872 = vpop.f32.mrb[0].mxu0
      %v873 = vadd.f32 0.0, %v872
      %v874 = vpop.f32.mrb[0].mxu0
      %875 = vmatprep.mubr.f32.mxu0 0.0
      %876 = vmatmul.mubr.f32.gmra.mrb[0].mxu0 %v500
      %v877 = vpop.f32.mrb[0].mxu0
      %v878 = vadd.f32 0.0, %v877
      %v879 = vpop.f32.mrb[0].mxu0
      %880 = vmatprep.mubr.f32.mxu0 0.0
      %881 = vmatmul.mubr.f32.gmra.mrb[0].mxu0 %v503
      %v882 = vpop.f32.mrb[0].mxu0
      %v883 = vadd.f32 0.0, %v882
      %v884 = vpop.f32.mrb[0].mxu0
      %885 = vmatprep.mubr.f32.mxu0 0.0
      %886 = vmatmul.mubr.f32.gmra.mrb[0].mxu0 %v506
      %v887 = vpop.f32.mrb[0].mxu0
      %v888 = vadd.f32 0.0, %v887
      %v889 = vpop.f32.mrb[0].mxu0
      %890 = vmatprep.mubr.f32.mxu0 0.0
      %891 = vmatmul.mubr.f32.gmra.mrb[0].mxu0 %v509
      %v892 = vpop.f32.mrb[0].mxu0
      %v893 = vadd.f32 0.0, %v892
      %v894 = vpop.f32.mrb[0].mxu0
      %895 = vdwg.mxu0
      %v896 = vlaneseq
      %v897 = vand.u32 %v896, 127
      %vm898 = vcmp.lt.s32.totalorder %v897, 8
      %v899 = vld [vmem:[%s242] sm:$0xff]
      %v900 = vld [vmem:[%s242 + $0x8] sm:$0xff]
      %v901 = vld [vmem:[%s242 + $0x10] sm:$0xff]
      %v902 = vld [vmem:[%s242 + $0x18] sm:$0xff]
      %v903 = vld [vmem:[%s242 + $0x20] sm:$0xff]
      %v904 = vld [vmem:[%s242 + $0x28] sm:$0xff]
      %v905 = vld [vmem:[%s242 + $0x30] sm:$0xff]
      %v906 = vld [vmem:[%s242 + $0x38] sm:$0xff]
      %v907 = vld [vmem:[%s242 + $0x40] sm:$0xff]
      %v908 = vld [vmem:[%s242 + $0x48] sm:$0xff]
      %v909 = vld [vmem:[%s242 + $0x50] sm:$0xff]
      %v910 = vld [vmem:[%s242 + $0x58] sm:$0xff]
      %v911 = vld [vmem:[%s242 + $0x60] sm:$0xff]
      %v912 = vld [vmem:[%s242 + $0x68] sm:$0xff]
      %v913 = vld [vmem:[%s242 + $0x70] sm:$0xff]
      %v914 = vld [vmem:[%s242 + $0x78] sm:$0xff]
      %v915 = vld [vmem:[%s242 + $0x80] sm:$0xff]
      %v916 = vld [vmem:[%s242 + $0x88] sm:$0xff]
      %v917 = vld [vmem:[%s242 + $0x90] sm:$0xff]
      %v918 = vld [vmem:[%s242 + $0x98] sm:$0xff]
      %v919 = vld [vmem:[%s242 + $0xa0] sm:$0xff]
      %v920 = vld [vmem:[%s242 + $0xa8] sm:$0xff]
      %v921 = vld [vmem:[%s242 + $0xb0] sm:$0xff]
      %v922 = vld [vmem:[%s242 + $0xb8] sm:$0xff]
      %v923 = vld [vmem:[%s242 + $0xc0] sm:$0xff]
      %v924 = vld [vmem:[%s242 + $0xc8] sm:$0xff]
      %v925 = vld [vmem:[%s242 + $0xd0] sm:$0xff]
      %v926 = vld [vmem:[%s242 + $0xd8] sm:$0xff]
      %v927 = vld [vmem:[%s242 + $0xe0] sm:$0xff]
      %v928 = vld [vmem:[%s242 + $0xe8] sm:$0xff]
      %v929 = vld [vmem:[%s242 + $0xf0] sm:$0xff]
      %v930 = vld [vmem:[%s242 + $0xf8] sm:$0xff]
      %v931 = vld [vmem:[%s242 + $0x100] sm:$0xff]
      %v932 = vld [vmem:[%s242 + $0x108] sm:$0xff]
      %v933 = vld [vmem:[%s242 + $0x110] sm:$0xff]
      %v934 = vld [vmem:[%s242 + $0x118] sm:$0xff]
      %v935 = vld [vmem:[%s242 + $0x120] sm:$0xff]
      %v936 = vld [vmem:[%s242 + $0x128] sm:$0xff]
      %v937 = vld [vmem:[%s242 + $0x130] sm:$0xff]
      %v938 = vld [vmem:[%s242 + $0x138] sm:$0xff]
      %v939 = vld [vmem:[%s242 + $0x140] sm:$0xff]
      %v940 = vld [vmem:[%s242 + $0x148] sm:$0xff]
      %v941 = vld [vmem:[%s242 + $0x150] sm:$0xff]
      %v942 = vld [vmem:[%s242 + $0x158] sm:$0xff]
      %v943 = vld [vmem:[%s242 + $0x160] sm:$0xff]
      %v944 = vld [vmem:[%s242 + $0x168] sm:$0xff]
      %v945 = vld [vmem:[%s242 + $0x170] sm:$0xff]
      %v946 = vld [vmem:[%s242 + $0x178] sm:$0xff]
      %v947 = vld [vmem:[%s242 + $0x180] sm:$0xff]
      %v948 = vld [vmem:[%s242 + $0x188] sm:$0xff]
      %v949 = vld [vmem:[%s242 + $0x190] sm:$0xff]
      %v950 = vld [vmem:[%s242 + $0x198] sm:$0xff]
      %v951 = vld [vmem:[%s242 + $0x1a0] sm:$0xff]
      %v952 = vld [vmem:[%s242 + $0x1a8] sm:$0xff]
      %v953 = vld [vmem:[%s242 + $0x1b0] sm:$0xff]
      %v954 = vld [vmem:[%s242 + $0x1b8] sm:$0xff]
      %v955 = vld [vmem:[%s242 + $0x1c0] sm:$0xff]
      %v956 = vld [vmem:[%s242 + $0x1c8] sm:$0xff]
      %v957 = vld [vmem:[%s242 + $0x1d0] sm:$0xff]
      %v958 = vld [vmem:[%s242 + $0x1d8] sm:$0xff]
      %v959 = vld [vmem:[%s242 + $0x1e0] sm:$0xff]
      %v960 = vld [vmem:[%s242 + $0x1e8] sm:$0xff]
      %v961 = vld [vmem:[%s242 + $0x1f0] sm:$0xff]
      %v962 = vld [vmem:[%s242 + $0x1f8] sm:$0xff]
      %v963 = vsel %vm898, %v578, %v899
      %v964 = vsel %vm898, %v583, %v900
      %v965 = vsel %vm898, %v588, %v901
      %v966 = vsel %vm898, %v593, %v902
      %v967 = vsel %vm898, %v598, %v903
      %v968 = vsel %vm898, %v603, %v904
      %v969 = vsel %vm898, %v608, %v905
      %v970 = vsel %vm898, %v613, %v906
      %v971 = vsel %vm898, %v618, %v907
      %v972 = vsel %vm898, %v623, %v908
      %v973 = vsel %vm898, %v628, %v909
      %v974 = vsel %vm898, %v633, %v910
      %v975 = vsel %vm898, %v638, %v911
      %v976 = vsel %vm898, %v643, %v912
      %v977 = vsel %vm898, %v648, %v913
      %v978 = vsel %vm898, %v653, %v914
      %v979 = vsel %vm898, %v658, %v915
      %v980 = vsel %vm898, %v663, %v916
      %v981 = vsel %vm898, %v668, %v917
      %v982 = vsel %vm898, %v673, %v918
      %v983 = vsel %vm898, %v678, %v919
      %v984 = vsel %vm898, %v683, %v920
      %v985 = vsel %vm898, %v688, %v921
      %v986 = vsel %vm898, %v693, %v922
      %v987 = vsel %vm898, %v698, %v923
      %v988 = vsel %vm898, %v703, %v924
      %v989 = vsel %vm898, %v708, %v925
      %v990 = vsel %vm898, %v713, %v926
      %v991 = vsel %vm898, %v718, %v927
      %v992 = vsel %vm898, %v723, %v928
      %v993 = vsel %vm898, %v728, %v929
      %v994 = vsel %vm898, %v733, %v930
      %v995 = vsel %vm898, %v738, %v931
      %v996 = vsel %vm898, %v743, %v932
      %v997 = vsel %vm898, %v748, %v933
      %v998 = vsel %vm898, %v753, %v934
      %v999 = vsel %vm898, %v758, %v935
      %v1000 = vsel %vm898, %v763, %v936
      %v1001 = vsel %vm898, %v768, %v937
      %v1002 = vsel %vm898, %v773, %v938
      %v1003 = vsel %vm898, %v778, %v939
      %v1004 = vsel %vm898, %v783, %v940
      %v1005 = vsel %vm898, %v788, %v941
      %v1006 = vsel %vm898, %v793, %v942
      %v1007 = vsel %vm898, %v798, %v943
      %v1008 = vsel %vm898, %v803, %v944
      %v1009 = vsel %vm898, %v808, %v945
      %v1010 = vsel %vm898, %v813, %v946
      %v1011 = vsel %vm898, %v818, %v947
      %v1012 = vsel %vm898, %v823, %v948
      %v1013 = vsel %vm898, %v828, %v949
      %v1014 = vsel %vm898, %v833, %v950
      %v1015 = vsel %vm898, %v838, %v951
      %v1016 = vsel %vm898, %v843, %v952
      %v1017 = vsel %vm898, %v848, %v953
      %v1018 = vsel %vm898, %v853, %v954
      %v1019 = vsel %vm898, %v858, %v955
      %v1020 = vsel %vm898, %v863, %v956
      %v1021 = vsel %vm898, %v868, %v957
      %v1022 = vsel %vm898, %v873, %v958
      %v1023 = vsel %vm898, %v878, %v959
      %v1024 = vsel %vm898, %v883, %v960
      %v1025 = vsel %vm898, %v888, %v961
      %v1026 = vsel %vm898, %v893, %v962
      %v1027 = vmul.f32 %v578, %v963
      %v1028 = vmul.f32 %v583, %v964
      %v1029 = vmul.f32 %v588, %v965
      %v1030 = vmul.f32 %v593, %v966
      %v1031 = vmul.f32 %v598, %v967
      %v1032 = vmul.f32 %v603, %v968
      %v1033 = vmul.f32 %v608, %v969
      %v1034 = vmul.f32 %v613, %v970
      %v1035 = vmul.f32 %v618, %v971
      %v1036 = vmul.f32 %v623, %v972
      %v1037 = vmul.f32 %v628, %v973
      %v1038 = vmul.f32 %v633, %v974
      %v1039 = vmul.f32 %v638, %v975
      %v1040 = vmul.f32 %v643, %v976
      %v1041 = vmul.f32 %v648, %v977
      %v1042 = vmul.f32 %v653, %v978
      %v1043 = vmul.f32 %v658, %v979
      %v1044 = vmul.f32 %v663, %v980
      %v1045 = vmul.f32 %v668, %v981
      %v1046 = vmul.f32 %v673, %v982
      %v1047 = vmul.f32 %v678, %v983
      %v1048 = vmul.f32 %v683, %v984
      %v1049 = vmul.f32 %v688, %v985
      %v1050 = vmul.f32 %v693, %v986
      %v1051 = vmul.f32 %v698, %v987
      %v1052 = vmul.f32 %v703, %v988
      %v1053 = vmul.f32 %v708, %v989
      %v1054 = vmul.f32 %v713, %v990
      %v1055 = vmul.f32 %v718, %v991
      %v1056 = vmul.f32 %v723, %v992
      %v1057 = vmul.f32 %v728, %v993
      %v1058 = vmul.f32 %v733, %v994
      %v1059 = vmul.f32 %v738, %v995
      %v1060 = vmul.f32 %v743, %v996
      %v1061 = vmul.f32 %v748, %v997
      %v1062 = vmul.f32 %v753, %v998
      %v1063 = vmul.f32 %v758, %v999
      %v1064 = vmul.f32 %v763, %v1000
      %v1065 = vmul.f32 %v768, %v1001
      %v1066 = vmul.f32 %v773, %v1002
      %v1067 = vmul.f32 %v778, %v1003
      %v1068 = vmul.f32 %v783, %v1004
      %v1069 = vmul.f32 %v788, %v1005
      %v1070 = vmul.f32 %v793, %v1006
      %v1071 = vmul.f32 %v798, %v1007
      %v1072 = vmul.f32 %v803, %v1008
      %v1073 = vmul.f32 %v808, %v1009
      %v1074 = vmul.f32 %v813, %v1010
      %v1075 = vmul.f32 %v818, %v1011
      %v1076 = vmul.f32 %v823, %v1012
      %v1077 = vmul.f32 %v828, %v1013
      %v1078 = vmul.f32 %v833, %v1014
      %v1079 = vmul.f32 %v838, %v1015
      %v1080 = vmul.f32 %v843, %v1016
      %v1081 = vmul.f32 %v848, %v1017
      %v1082 = vmul.f32 %v853, %v1018
      %v1083 = vmul.f32 %v858, %v1019
      %v1084 = vmul.f32 %v863, %v1020
      %v1085 = vmul.f32 %v868, %v1021
      %v1086 = vmul.f32 %v873, %v1022
      %v1087 = vmul.f32 %v878, %v1023
      %v1088 = vmul.f32 %v883, %v1024
      %v1089 = vmul.f32 %v888, %v1025
      %v1090 = vmul.f32 %v893, %v1026
      %vm1091 = vcmask 195584
      %v1092 = vsel %vm1091, %v1027, 0.0
      %1093 = vadd.xlane.f32.xlu0 %v1092
      %v1094 = vpop.xlane.xlu0 %1093
      %v1095 = vsel %vm1091, %v1028, 0.0
      %1096 = vadd.xlane.f32.xlu0 %v1095
      %v1097 = vpop.xlane.xlu0 %1096
      %v1098 = vsel %vm1091, %v1029, 0.0
      %1099 = vadd.xlane.f32.xlu0 %v1098
      %v1100 = vpop.xlane.xlu0 %1099
      %v1101 = vsel %vm1091, %v1030, 0.0
      %1102 = vadd.xlane.f32.xlu0 %v1101
      %v1103 = vpop.xlane.xlu0 %1102
      %v1104 = vsel %vm1091, %v1031, 0.0
      %1105 = vadd.xlane.f32.xlu0 %v1104
      %v1106 = vpop.xlane.xlu0 %1105
      %v1107 = vsel %vm1091, %v1032, 0.0
      %1108 = vadd.xlane.f32.xlu0 %v1107
      %v1109 = vpop.xlane.xlu0 %1108
      %v1110 = vsel %vm1091, %v1033, 0.0
      %1111 = vadd.xlane.f32.xlu0 %v1110
      %v1112 = vpop.xlane.xlu0 %1111
      %v1113 = vsel %vm1091, %v1034, 0.0
      %1114 = vadd.xlane.f32.xlu0 %v1113
      %v1115 = vpop.xlane.xlu0 %1114
      %v1116 = vsel %vm1091, %v1035, 0.0
      %1117 = vadd.xlane.f32.xlu0 %v1116
      %v1118 = vpop.xlane.xlu0 %1117
      %v1119 = vsel %vm1091, %v1036, 0.0
      %1120 = vadd.xlane.f32.xlu0 %v1119
      %v1121 = vpop.xlane.xlu0 %1120
      %v1122 = vsel %vm1091, %v1037, 0.0
      %1123 = vadd.xlane.f32.xlu0 %v1122
      %v1124 = vpop.xlane.xlu0 %1123
      %v1125 = vsel %vm1091, %v1038, 0.0
      %1126 = vadd.xlane.f32.xlu0 %v1125
      %v1127 = vpop.xlane.xlu0 %1126
      %v1128 = vsel %vm1091, %v1039, 0.0
      %1129 = vadd.xlane.f32.xlu0 %v1128
      %v1130 = vpop.xlane.xlu0 %1129
      %v1131 = vsel %vm1091, %v1040, 0.0
      %1132 = vadd.xlane.f32.xlu0 %v1131
      %v1133 = vpop.xlane.xlu0 %1132
      %v1134 = vsel %vm1091, %v1041, 0.0
      %1135 = vadd.xlane.f32.xlu0 %v1134
      %v1136 = vpop.xlane.xlu0 %1135
      %v1137 = vsel %vm1091, %v1042, 0.0
      %1138 = vadd.xlane.f32.xlu0 %v1137
      %v1139 = vpop.xlane.xlu0 %1138
      %v1140 = vsel %vm1091, %v1043, 0.0
      %1141 = vadd.xlane.f32.xlu0 %v1140
      %v1142 = vpop.xlane.xlu0 %1141
      %v1143 = vsel %vm1091, %v1044, 0.0
      %1144 = vadd.xlane.f32.xlu0 %v1143
      %v1145 = vpop.xlane.xlu0 %1144
      %v1146 = vsel %vm1091, %v1045, 0.0
      %1147 = vadd.xlane.f32.xlu0 %v1146
      %v1148 = vpop.xlane.xlu0 %1147
      %v1149 = vsel %vm1091, %v1046, 0.0
      %1150 = vadd.xlane.f32.xlu0 %v1149
      %v1151 = vpop.xlane.xlu0 %1150
      %v1152 = vsel %vm1091, %v1047, 0.0
      %1153 = vadd.xlane.f32.xlu0 %v1152
      %v1154 = vpop.xlane.xlu0 %1153
      %v1155 = vsel %vm1091, %v1048, 0.0
      %1156 = vadd.xlane.f32.xlu0 %v1155
      %v1157 = vpop.xlane.xlu0 %1156
      %v1158 = vsel %vm1091, %v1049, 0.0
      %1159 = vadd.xlane.f32.xlu0 %v1158
      %v1160 = vpop.xlane.xlu0 %1159
      %v1161 = vsel %vm1091, %v1050, 0.0
      %1162 = vadd.xlane.f32.xlu0 %v1161
      %v1163 = vpop.xlane.xlu0 %1162
      %v1164 = vsel %vm1091, %v1051, 0.0
      %1165 = vadd.xlane.f32.xlu0 %v1164
      %v1166 = vpop.xlane.xlu0 %1165
      %v1167 = vsel %vm1091, %v1052, 0.0
      %1168 = vadd.xlane.f32.xlu0 %v1167
      %v1169 = vpop.xlane.xlu0 %1168
      %v1170 = vsel %vm1091, %v1053, 0.0
      %1171 = vadd.xlane.f32.xlu0 %v1170
      %v1172 = vpop.xlane.xlu0 %1171
      %v1173 = vsel %vm1091, %v1054, 0.0
      %1174 = vadd.xlane.f32.xlu0 %v1173
      %v1175 = vpop.xlane.xlu0 %1174
      %v1176 = vsel %vm1091, %v1055, 0.0
      %1177 = vadd.xlane.f32.xlu0 %v1176
      %v1178 = vpop.xlane.xlu0 %1177
      %v1179 = vsel %vm1091, %v1056, 0.0
      %1180 = vadd.xlane.f32.xlu0 %v1179
      %v1181 = vpop.xlane.xlu0 %1180
      %v1182 = vsel %vm1091, %v1057, 0.0
      %1183 = vadd.xlane.f32.xlu0 %v1182
      %v1184 = vpop.xlane.xlu0 %1183
      %v1185 = vsel %vm1091, %v1058, 0.0
      %1186 = vadd.xlane.f32.xlu0 %v1185
      %v1187 = vpop.xlane.xlu0 %1186
      %v1188 = vsel %vm1091, %v1059, 0.0
      %1189 = vadd.xlane.f32.xlu0 %v1188
      %v1190 = vpop.xlane.xlu0 %1189
      %v1191 = vsel %vm1091, %v1060, 0.0
      %1192 = vadd.xlane.f32.xlu0 %v1191
      %v1193 = vpop.xlane.xlu0 %1192
      %v1194 = vsel %vm1091, %v1061, 0.0
      %1195 = vadd.xlane.f32.xlu0 %v1194
      %v1196 = vpop.xlane.xlu0 %1195
      %v1197 = vsel %vm1091, %v1062, 0.0
      %1198 = vadd.xlane.f32.xlu0 %v1197
      %v1199 = vpop.xlane.xlu0 %1198
      %v1200 = vsel %vm1091, %v1063, 0.0
      %1201 = vadd.xlane.f32.xlu0 %v1200
      %v1202 = vpop.xlane.xlu0 %1201
      %v1203 = vsel %vm1091, %v1064, 0.0
      %1204 = vadd.xlane.f32.xlu0 %v1203
      %v1205 = vpop.xlane.xlu0 %1204
      %v1206 = vsel %vm1091, %v1065, 0.0
      %1207 = vadd.xlane.f32.xlu0 %v1206
      %v1208 = vpop.xlane.xlu0 %1207
      %v1209 = vsel %vm1091, %v1066, 0.0
      %1210 = vadd.xlane.f32.xlu0 %v1209
      %v1211 = vpop.xlane.xlu0 %1210
      %v1212 = vsel %vm1091, %v1067, 0.0
      %1213 = vadd.xlane.f32.xlu0 %v1212
      %v1214 = vpop.xlane.xlu0 %1213
      %v1215 = vsel %vm1091, %v1068, 0.0
      %1216 = vadd.xlane.f32.xlu0 %v1215
      %v1217 = vpop.xlane.xlu0 %1216
      %v1218 = vsel %vm1091, %v1069, 0.0
      %1219 = vadd.xlane.f32.xlu0 %v1218
      %v1220 = vpop.xlane.xlu0 %1219
      %v1221 = vsel %vm1091, %v1070, 0.0
      %1222 = vadd.xlane.f32.xlu0 %v1221
      %v1223 = vpop.xlane.xlu0 %1222
      %v1224 = vsel %vm1091, %v1071, 0.0
      %1225 = vadd.xlane.f32.xlu0 %v1224
      %v1226 = vpop.xlane.xlu0 %1225
      %v1227 = vsel %vm1091, %v1072, 0.0
      %1228 = vadd.xlane.f32.xlu0 %v1227
      %v1229 = vpop.xlane.xlu0 %1228
      %v1230 = vsel %vm1091, %v1073, 0.0
      %1231 = vadd.xlane.f32.xlu0 %v1230
      %v1232 = vpop.xlane.xlu0 %1231
      %v1233 = vsel %vm1091, %v1074, 0.0
      %1234 = vadd.xlane.f32.xlu0 %v1233
      %v1235 = vpop.xlane.xlu0 %1234
      %v1236 = vsel %vm1091, %v1075, 0.0
      %1237 = vadd.xlane.f32.xlu0 %v1236
      %v1238 = vpop.xlane.xlu0 %1237
      %v1239 = vsel %vm1091, %v1076, 0.0
      %1240 = vadd.xlane.f32.xlu0 %v1239
      %v1241 = vpop.xlane.xlu0 %1240
      %v1242 = vsel %vm1091, %v1077, 0.0
      %1243 = vadd.xlane.f32.xlu0 %v1242
      %v1244 = vpop.xlane.xlu0 %1243
      %v1245 = vsel %vm1091, %v1078, 0.0
      %1246 = vadd.xlane.f32.xlu0 %v1245
      %v1247 = vpop.xlane.xlu0 %1246
      %v1248 = vsel %vm1091, %v1079, 0.0
      %1249 = vadd.xlane.f32.xlu0 %v1248
      %v1250 = vpop.xlane.xlu0 %1249
      %v1251 = vsel %vm1091, %v1080, 0.0
      %1252 = vadd.xlane.f32.xlu0 %v1251
      %v1253 = vpop.xlane.xlu0 %1252
      %v1254 = vsel %vm1091, %v1081, 0.0
      %1255 = vadd.xlane.f32.xlu0 %v1254
      %v1256 = vpop.xlane.xlu0 %1255
      %v1257 = vsel %vm1091, %v1082, 0.0
      %1258 = vadd.xlane.f32.xlu0 %v1257
      %v1259 = vpop.xlane.xlu0 %1258
      %v1260 = vsel %vm1091, %v1083, 0.0
      %1261 = vadd.xlane.f32.xlu0 %v1260
      %v1262 = vpop.xlane.xlu0 %1261
      %v1263 = vsel %vm1091, %v1084, 0.0
      %1264 = vadd.xlane.f32.xlu0 %v1263
      %v1265 = vpop.xlane.xlu0 %1264
      %v1266 = vsel %vm1091, %v1085, 0.0
      %1267 = vadd.xlane.f32.xlu0 %v1266
      %v1268 = vpop.xlane.xlu0 %1267
      %v1269 = vsel %vm1091, %v1086, 0.0
      %1270 = vadd.xlane.f32.xlu0 %v1269
      %v1271 = vpop.xlane.xlu0 %1270
      %v1272 = vsel %vm1091, %v1087, 0.0
      %1273 = vadd.xlane.f32.xlu0 %v1272
      %v1274 = vpop.xlane.xlu0 %1273
      %v1275 = vsel %vm1091, %v1088, 0.0
      %1276 = vadd.xlane.f32.xlu0 %v1275
      %v1277 = vpop.xlane.xlu0 %1276
      %v1278 = vsel %vm1091, %v1089, 0.0
      %1279 = vadd.xlane.f32.xlu0 %v1278
      %v1280 = vpop.xlane.xlu0 %1279
      %v1281 = vsel %vm1091, %v1090, 0.0
      %1282 = vadd.xlane.f32.xlu0 %v1281
      %v1283 = vpop.xlane.xlu0 %1282
      %v1284 = vadd.f32 %v1094, 0.001
      %v1285 = vadd.f32 %v1097, 0.001
      %v1286 = vadd.f32 %v1100, 0.001
      %v1287 = vadd.f32 %v1103, 0.001
      %v1288 = vadd.f32 %v1106, 0.001
      %v1289 = vadd.f32 %v1109, 0.001
      %v1290 = vadd.f32 %v1112, 0.001
      %v1291 = vadd.f32 %v1115, 0.001
      %v1292 = vadd.f32 %v1118, 0.001
      %v1293 = vadd.f32 %v1121, 0.001
      %v1294 = vadd.f32 %v1124, 0.001
      %v1295 = vadd.f32 %v1127, 0.001
      %v1296 = vadd.f32 %v1130, 0.001
      %v1297 = vadd.f32 %v1133, 0.001
      %v1298 = vadd.f32 %v1136, 0.001
      %v1299 = vadd.f32 %v1139, 0.001
      %v1300 = vadd.f32 %v1142, 0.001
      %v1301 = vadd.f32 %v1145, 0.001
      %v1302 = vadd.f32 %v1148, 0.001
      %v1303 = vadd.f32 %v1151, 0.001
      %v1304 = vadd.f32 %v1154, 0.001
      %v1305 = vadd.f32 %v1157, 0.001
      %v1306 = vadd.f32 %v1160, 0.001
      %v1307 = vadd.f32 %v1163, 0.001
      %v1308 = vadd.f32 %v1166, 0.001
      %v1309 = vadd.f32 %v1169, 0.001
      %v1310 = vadd.f32 %v1172, 0.001
      %v1311 = vadd.f32 %v1175, 0.001
      %v1312 = vadd.f32 %v1178, 0.001
      %v1313 = vadd.f32 %v1181, 0.001
      %v1314 = vadd.f32 %v1184, 0.001
      %v1315 = vadd.f32 %v1187, 0.001
      %v1316 = vadd.f32 %v1190, 0.001
      %v1317 = vadd.f32 %v1193, 0.001
      %v1318 = vadd.f32 %v1196, 0.001
      %v1319 = vadd.f32 %v1199, 0.001
      %v1320 = vadd.f32 %v1202, 0.001
      %v1321 = vadd.f32 %v1205, 0.001
      %v1322 = vadd.f32 %v1208, 0.001
      %v1323 = vadd.f32 %v1211, 0.001
      %v1324 = vadd.f32 %v1214, 0.001
      %v1325 = vadd.f32 %v1217, 0.001
      %v1326 = vadd.f32 %v1220, 0.001
      %v1327 = vadd.f32 %v1223, 0.001
      %v1328 = vadd.f32 %v1226, 0.001
      %v1329 = vadd.f32 %v1229, 0.001
      %v1330 = vadd.f32 %v1232, 0.001
      %v1331 = vadd.f32 %v1235, 0.001
      %v1332 = vadd.f32 %v1238, 0.001
      %v1333 = vadd.f32 %v1241, 0.001
      %v1334 = vadd.f32 %v1244, 0.001
      %v1335 = vadd.f32 %v1247, 0.001
      %v1336 = vadd.f32 %v1250, 0.001
      %v1337 = vadd.f32 %v1253, 0.001
      %v1338 = vadd.f32 %v1256, 0.001
      %v1339 = vadd.f32 %v1259, 0.001
      %v1340 = vadd.f32 %v1262, 0.001
      %v1341 = vadd.f32 %v1265, 0.001
      %v1342 = vadd.f32 %v1268, 0.001
      %v1343 = vadd.f32 %v1271, 0.001
      %v1344 = vadd.f32 %v1274, 0.001
      %v1345 = vadd.f32 %v1277, 0.001
      %v1346 = vadd.f32 %v1280, 0.001
      %v1347 = vadd.f32 %v1283, 0.001
      %v1348 = vrcp.pop %v1284
      %v1349 = vrcp.pop %v1285
      %v1350 = vrcp.pop %v1286
      %v1351 = vrcp.pop %v1287
      %v1352 = vrcp.pop %v1288
      %v1353 = vrcp.pop %v1289
      %v1354 = vrcp.pop %v1290
      %v1355 = vrcp.pop %v1291
      %v1356 = vrcp.pop %v1292
      %v1357 = vrcp.pop %v1293
      %v1358 = vrcp.pop %v1294
      %v1359 = vrcp.pop %v1295
      %v1360 = vrcp.pop %v1296
      %v1361 = vrcp.pop %v1297
      %v1362 = vrcp.pop %v1298
      %v1363 = vrcp.pop %v1299
      %v1364 = vrcp.pop %v1300
      %v1365 = vrcp.pop %v1301
      %v1366 = vrcp.pop %v1302
      %v1367 = vrcp.pop %v1303
      %v1368 = vrcp.pop %v1304
      %v1369 = vrcp.pop %v1305
      %v1370 = vrcp.pop %v1306
      %v1371 = vrcp.pop %v1307
      %v1372 = vrcp.pop %v1308
      %v1373 = vrcp.pop %v1309
      %v1374 = vrcp.pop %v1310
      %v1375 = vrcp.pop %v1311
      %v1376 = vrcp.pop %v1312
      %v1377 = vrcp.pop %v1313
      %v1378 = vrcp.pop %v1314
      %v1379 = vrcp.pop %v1315
      %v1380 = vrcp.pop %v1316
      %v1381 = vrcp.pop %v1317
      %v1382 = vrcp.pop %v1318
      %v1383 = vrcp.pop %v1319
      %v1384 = vrcp.pop %v1320
      %v1385 = vrcp.pop %v1321
      %v1386 = vrcp.pop %v1322
      %v1387 = vrcp.pop %v1323
      %v1388 = vrcp.pop %v1324
      %v1389 = vrcp.pop %v1325
      %v1390 = vrcp.pop %v1326
      %v1391 = vrcp.pop %v1327
      %v1392 = vrcp.pop %v1328
      %v1393 = vrcp.pop %v1329
      %v1394 = vrcp.pop %v1330
      %v1395 = vrcp.pop %v1331
      %v1396 = vrcp.pop %v1332
      %v1397 = vrcp.pop %v1333
      %v1398 = vrcp.pop %v1334
      %v1399 = vrcp.pop %v1335
      %v1400 = vrcp.pop %v1336
      %v1401 = vrcp.pop %v1337
      %v1402 = vrcp.pop %v1338
      %v1403 = vrcp.pop %v1339
      %v1404 = vrcp.pop %v1340
      %v1405 = vrcp.pop %v1341
      %v1406 = vrcp.pop %v1342
      %v1407 = vrcp.pop %v1343
      %v1408 = vrcp.pop %v1344
      %v1409 = vrcp.pop %v1345
      %v1410 = vrcp.pop %v1346
      %v1411 = vrcp.pop %v1347
      %v1412 = vmul.f32 %v1284, %v1348
      %v1413 = vmul.f32 %v1285, %v1349
      %v1414 = vmul.f32 %v1286, %v1350
      %v1415 = vmul.f32 %v1287, %v1351
      %v1416 = vmul.f32 %v1288, %v1352
      %v1417 = vmul.f32 %v1289, %v1353
      %v1418 = vmul.f32 %v1290, %v1354
      %v1419 = vmul.f32 %v1291, %v1355
      %v1420 = vmul.f32 %v1292, %v1356
      %v1421 = vmul.f32 %v1293, %v1357
      %v1422 = vmul.f32 %v1294, %v1358
      %v1423 = vmul.f32 %v1295, %v1359
      %v1424 = vmul.f32 %v1296, %v1360
      %v1425 = vmul.f32 %v1297, %v1361
      %v1426 = vmul.f32 %v1298, %v1362
      %v1427 = vmul.f32 %v1299, %v1363
      %v1428 = vmul.f32 %v1300, %v1364
      %v1429 = vmul.f32 %v1301, %v1365
      %v1430 = vmul.f32 %v1302, %v1366
      %v1431 = vmul.f32 %v1303, %v1367
      %v1432 = vmul.f32 %v1304, %v1368
      %v1433 = vmul.f32 %v1305, %v1369
      %v1434 = vmul.f32 %v1306, %v1370
      %v1435 = vmul.f32 %v1307, %v1371
      %v1436 = vmul.f32 %v1308, %v1372
      %v1437 = vmul.f32 %v1309, %v1373
      %v1438 = vmul.f32 %v1310, %v1374
      %v1439 = vmul.f32 %v1311, %v1375
      %v1440 = vmul.f32 %v1312, %v1376
      %v1441 = vmul.f32 %v1313, %v1377
      %v1442 = vmul.f32 %v1314, %v1378
      %v1443 = vmul.f32 %v1315, %v1379
      %v1444 = vmul.f32 %v1316, %v1380
      %v1445 = vmul.f32 %v1317, %v1381
      %v1446 = vmul.f32 %v1318, %v1382
      %v1447 = vmul.f32 %v1319, %v1383
      %v1448 = vmul.f32 %v1320, %v1384
      %v1449 = vmul.f32 %v1321, %v1385
      %v1450 = vmul.f32 %v1322, %v1386
      %v1451 = vmul.f32 %v1323, %v1387
      %v1452 = vmul.f32 %v1324, %v1388
      %v1453 = vmul.f32 %v1325, %v1389
      %v1454 = vmul.f32 %v1326, %v1390
      %v1455 = vmul.f32 %v1327, %v1391
      %v1456 = vmul.f32 %v1328, %v1392
      %v1457 = vmul.f32 %v1329, %v1393
      %v1458 = vmul.f32 %v1330, %v1394
      %v1459 = vmul.f32 %v1331, %v1395
      %v1460 = vmul.f32 %v1332, %v1396
      %v1461 = vmul.f32 %v1333, %v1397
      %v1462 = vmul.f32 %v1334, %v1398
      %v1463 = vmul.f32 %v1335, %v1399
      %v1464 = vmul.f32 %v1336, %v1400
      %v1465 = vmul.f32 %v1337, %v1401
      %v1466 = vmul.f32 %v1338, %v1402
      %v1467 = vmul.f32 %v1339, %v1403
      %v1468 = vmul.f32 %v1340, %v1404
      %v1469 = vmul.f32 %v1341, %v1405
      %v1470 = vmul.f32 %v1342, %v1406
      %v1471 = vmul.f32 %v1343, %v1407
      %v1472 = vmul.f32 %v1344, %v1408
      %v1473 = vmul.f32 %v1345, %v1409
      %v1474 = vmul.f32 %v1346, %v1410
      %v1475 = vmul.f32 %v1347, %v1411
      %v1476 = vsub.f32 2.0, %v1412
      %v1477 = vsub.f32 2.0, %v1413
      %v1478 = vsub.f32 2.0, %v1414
      %v1479 = vsub.f32 2.0, %v1415
      %v1480 = vsub.f32 2.0, %v1416
      %v1481 = vsub.f32 2.0, %v1417
      %v1482 = vsub.f32 2.0, %v1418
      %v1483 = vsub.f32 2.0, %v1419
      %v1484 = vsub.f32 2.0, %v1420
      %v1485 = vsub.f32 2.0, %v1421
      %v1486 = vsub.f32 2.0, %v1422
      %v1487 = vsub.f32 2.0, %v1423
      %v1488 = vsub.f32 2.0, %v1424
      %v1489 = vsub.f32 2.0, %v1425
      %v1490 = vsub.f32 2.0, %v1426
      %v1491 = vsub.f32 2.0, %v1427
      %v1492 = vsub.f32 2.0, %v1428
      %v1493 = vsub.f32 2.0, %v1429
      %v1494 = vsub.f32 2.0, %v1430
      %v1495 = vsub.f32 2.0, %v1431
      %v1496 = vsub.f32 2.0, %v1432
      %v1497 = vsub.f32 2.0, %v1433
      %v1498 = vsub.f32 2.0, %v1434
      %v1499 = vsub.f32 2.0, %v1435
      %v1500 = vsub.f32 2.0, %v1436
      %v1501 = vsub.f32 2.0, %v1437
      %v1502 = vsub.f32 2.0, %v1438
      %v1503 = vsub.f32 2.0, %v1439
      %v1504 = vsub.f32 2.0, %v1440
      %v1505 = vsub.f32 2.0, %v1441
      %v1506 = vsub.f32 2.0, %v1442
      %v1507 = vsub.f32 2.0, %v1443
      %v1508 = vsub.f32 2.0, %v1444
      %v1509 = vsub.f32 2.0, %v1445
      %v1510 = vsub.f32 2.0, %v1446
      %v1511 = vsub.f32 2.0, %v1447
      %v1512 = vsub.f32 2.0, %v1448
      %v1513 = vsub.f32 2.0, %v1449
      %v1514 = vsub.f32 2.0, %v1450
      %v1515 = vsub.f32 2.0, %v1451
      %v1516 = vsub.f32 2.0, %v1452
      %v1517 = vsub.f32 2.0, %v1453
      %v1518 = vsub.f32 2.0, %v1454
      %v1519 = vsub.f32 2.0, %v1455
      %v1520 = vsub.f32 2.0, %v1456
      %v1521 = vsub.f32 2.0, %v1457
      %v1522 = vsub.f32 2.0, %v1458
      %v1523 = vsub.f32 2.0, %v1459
      %v1524 = vsub.f32 2.0, %v1460
      %v1525 = vsub.f32 2.0, %v1461
      %v1526 = vsub.f32 2.0, %v1462
      %v1527 = vsub.f32 2.0, %v1463
      %v1528 = vsub.f32 2.0, %v1464
      %v1529 = vsub.f32 2.0, %v1465
      %v1530 = vsub.f32 2.0, %v1466
      %v1531 = vsub.f32 2.0, %v1467
      %v1532 = vsub.f32 2.0, %v1468
      %v1533 = vsub.f32 2.0, %v1469
      %v1534 = vsub.f32 2.0, %v1470
      %v1535 = vsub.f32 2.0, %v1471
      %v1536 = vsub.f32 2.0, %v1472
      %v1537 = vsub.f32 2.0, %v1473
      %v1538 = vsub.f32 2.0, %v1474
      %v1539 = vsub.f32 2.0, %v1475
      %v1540 = vmul.f32 %v1348, %v1476
      %v1541 = vmul.f32 %v1349, %v1477
      %v1542 = vmul.f32 %v1350, %v1478
      %v1543 = vmul.f32 %v1351, %v1479
      %v1544 = vmul.f32 %v1352, %v1480
      %v1545 = vmul.f32 %v1353, %v1481
      %v1546 = vmul.f32 %v1354, %v1482
      %v1547 = vmul.f32 %v1355, %v1483
      %v1548 = vmul.f32 %v1356, %v1484
      %v1549 = vmul.f32 %v1357, %v1485
      %v1550 = vmul.f32 %v1358, %v1486
      %v1551 = vmul.f32 %v1359, %v1487
      %v1552 = vmul.f32 %v1360, %v1488
      %v1553 = vmul.f32 %v1361, %v1489
      %v1554 = vmul.f32 %v1362, %v1490
      %v1555 = vmul.f32 %v1363, %v1491
      %v1556 = vmul.f32 %v1364, %v1492
      %v1557 = vmul.f32 %v1365, %v1493
      %v1558 = vmul.f32 %v1366, %v1494
      %v1559 = vmul.f32 %v1367, %v1495
      %v1560 = vmul.f32 %v1368, %v1496
      %v1561 = vmul.f32 %v1369, %v1497
      %v1562 = vmul.f32 %v1370, %v1498
      %v1563 = vmul.f32 %v1371, %v1499
      %v1564 = vmul.f32 %v1372, %v1500
      %v1565 = vmul.f32 %v1373, %v1501
      %v1566 = vmul.f32 %v1374, %v1502
      %v1567 = vmul.f32 %v1375, %v1503
      %v1568 = vmul.f32 %v1376, %v1504
      %v1569 = vmul.f32 %v1377, %v1505
      %v1570 = vmul.f32 %v1378, %v1506
      %v1571 = vmul.f32 %v1379, %v1507
      %v1572 = vmul.f32 %v1380, %v1508
      %v1573 = vmul.f32 %v1381, %v1509
      %v1574 = vmul.f32 %v1382, %v1510
      %v1575 = vmul.f32 %v1383, %v1511
      %v1576 = vmul.f32 %v1384, %v1512
      %v1577 = vmul.f32 %v1385, %v1513
      %v1578 = vmul.f32 %v1386, %v1514
      %v1579 = vmul.f32 %v1387, %v1515
      %v1580 = vmul.f32 %v1388, %v1516
      %v1581 = vmul.f32 %v1389, %v1517
      %v1582 = vmul.f32 %v1390, %v1518
      %v1583 = vmul.f32 %v1391, %v1519
      %v1584 = vmul.f32 %v1392, %v1520
      %v1585 = vmul.f32 %v1393, %v1521
      %v1586 = vmul.f32 %v1394, %v1522
      %v1587 = vmul.f32 %v1395, %v1523
      %v1588 = vmul.f32 %v1396, %v1524
      %v1589 = vmul.f32 %v1397, %v1525
      %v1590 = vmul.f32 %v1398, %v1526
      %v1591 = vmul.f32 %v1399, %v1527
      %v1592 = vmul.f32 %v1400, %v1528
      %v1593 = vmul.f32 %v1401, %v1529
      %v1594 = vmul.f32 %v1402, %v1530
      %v1595 = vmul.f32 %v1403, %v1531
      %v1596 = vmul.f32 %v1404, %v1532
      %v1597 = vmul.f32 %v1405, %v1533
      %v1598 = vmul.f32 %v1406, %v1534
      %v1599 = vmul.f32 %v1407, %v1535
      %v1600 = vmul.f32 %v1408, %v1536
      %v1601 = vmul.f32 %v1409, %v1537
      %v1602 = vmul.f32 %v1410, %v1538
      %v1603 = vmul.f32 %v1411, %v1539
      %v1604 = vmul.f32 %v1027, %v1540
      %v1605 = vmul.f32 %v1028, %v1541
      %v1606 = vmul.f32 %v1029, %v1542
      %v1607 = vmul.f32 %v1030, %v1543
      %v1608 = vmul.f32 %v1031, %v1544
      %v1609 = vmul.f32 %v1032, %v1545
      %v1610 = vmul.f32 %v1033, %v1546
      %v1611 = vmul.f32 %v1034, %v1547
      %v1612 = vmul.f32 %v1035, %v1548
      %v1613 = vmul.f32 %v1036, %v1549
      %v1614 = vmul.f32 %v1037, %v1550
      %v1615 = vmul.f32 %v1038, %v1551
      %v1616 = vmul.f32 %v1039, %v1552
      %v1617 = vmul.f32 %v1040, %v1553
      %v1618 = vmul.f32 %v1041, %v1554
      %v1619 = vmul.f32 %v1042, %v1555
      %v1620 = vmul.f32 %v1043, %v1556
      %v1621 = vmul.f32 %v1044, %v1557
      %v1622 = vmul.f32 %v1045, %v1558
      %v1623 = vmul.f32 %v1046, %v1559
      %v1624 = vmul.f32 %v1047, %v1560
      %v1625 = vmul.f32 %v1048, %v1561
      %v1626 = vmul.f32 %v1049, %v1562
      %v1627 = vmul.f32 %v1050, %v1563
      %v1628 = vmul.f32 %v1051, %v1564
      %v1629 = vmul.f32 %v1052, %v1565
      %v1630 = vmul.f32 %v1053, %v1566
      %v1631 = vmul.f32 %v1054, %v1567
      %v1632 = vmul.f32 %v1055, %v1568
      %v1633 = vmul.f32 %v1056, %v1569
      %v1634 = vmul.f32 %v1057, %v1570
      %v1635 = vmul.f32 %v1058, %v1571
      %v1636 = vmul.f32 %v1059, %v1572
      %v1637 = vmul.f32 %v1060, %v1573
      %v1638 = vmul.f32 %v1061, %v1574
      %v1639 = vmul.f32 %v1062, %v1575
      %v1640 = vmul.f32 %v1063, %v1576
      %v1641 = vmul.f32 %v1064, %v1577
      %v1642 = vmul.f32 %v1065, %v1578
      %v1643 = vmul.f32 %v1066, %v1579
      %v1644 = vmul.f32 %v1067, %v1580
      %v1645 = vmul.f32 %v1068, %v1581
      %v1646 = vmul.f32 %v1069, %v1582
      %v1647 = vmul.f32 %v1070, %v1583
      %v1648 = vmul.f32 %v1071, %v1584
      %v1649 = vmul.f32 %v1072, %v1585
      %v1650 = vmul.f32 %v1073, %v1586
      %v1651 = vmul.f32 %v1074, %v1587
      %v1652 = vmul.f32 %v1075, %v1588
      %v1653 = vmul.f32 %v1076, %v1589
      %v1654 = vmul.f32 %v1077, %v1590
      %v1655 = vmul.f32 %v1078, %v1591
      %v1656 = vmul.f32 %v1079, %v1592
      %v1657 = vmul.f32 %v1080, %v1593
      %v1658 = vmul.f32 %v1081, %v1594
      %v1659 = vmul.f32 %v1082, %v1595
      %v1660 = vmul.f32 %v1083, %v1596
      %v1661 = vmul.f32 %v1084, %v1597
      %v1662 = vmul.f32 %v1085, %v1598
      %v1663 = vmul.f32 %v1086, %v1599
      %v1664 = vmul.f32 %v1087, %v1600
      %v1665 = vmul.f32 %v1088, %v1601
      %v1666 = vmul.f32 %v1089, %v1602
      %v1667 = vmul.f32 %v1090, %v1603
      %v1668 = vld [vmem:[%s3] sm:$0xff]
      %v1669 = vld [vmem:[%s3 + $0x8] sm:$0xff]
      %v1670 = vld [vmem:[%s3 + $0x10] sm:$0xff]
      %v1671 = vld [vmem:[%s4] sm:$0x1]
      %v1673 = vlaneseq
      %v1674 = vshrl.u32 %v1673, 7
      %v1675 = vsub.s32 0, %v1674
      %v1676 = vrot.slane %v1671, %v1675
      %v1679 = vsel %vm1091, %v1604, 0
      %v1682 = vsel %vm1091, %v1605, 0
      %v1685 = vsel %vm1091, %v1606, 0
      %v1688 = vsel %vm1091, %v1607, 0
      %v1691 = vsel %vm1091, %v1608, 0
      %v1694 = vsel %vm1091, %v1609, 0
      %v1697 = vsel %vm1091, %v1610, 0
      %v1700 = vsel %vm1091, %v1611, 0
      %v1703 = vsel %vm1091, %v1612, 0
      %v1706 = vsel %vm1091, %v1613, 0
      %v1709 = vsel %vm1091, %v1614, 0
      %v1712 = vsel %vm1091, %v1615, 0
      %v1715 = vsel %vm1091, %v1616, 0
      %v1718 = vsel %vm1091, %v1617, 0
      %v1721 = vsel %vm1091, %v1618, 0
      %v1724 = vsel %vm1091, %v1619, 0
      %v1727 = vsel %vm1091, %v1620, 0
      %v1730 = vsel %vm1091, %v1621, 0
      %v1733 = vsel %vm1091, %v1622, 0
      %v1736 = vsel %vm1091, %v1623, 0
      %v1739 = vsel %vm1091, %v1624, 0
      %v1742 = vsel %vm1091, %v1625, 0
      %v1745 = vsel %vm1091, %v1626, 0
      %v1748 = vsel %vm1091, %v1627, 0
      %v1751 = vsel %vm1091, %v1628, 0
      %v1754 = vsel %vm1091, %v1629, 0
      %v1757 = vsel %vm1091, %v1630, 0
      %v1760 = vsel %vm1091, %v1631, 0
      %v1763 = vsel %vm1091, %v1632, 0
      %v1766 = vsel %vm1091, %v1633, 0
      %v1769 = vsel %vm1091, %v1634, 0
      %v1772 = vsel %vm1091, %v1635, 0
      %v1775 = vsel %vm1091, %v1636, 0
      %v1778 = vsel %vm1091, %v1637, 0
      %v1781 = vsel %vm1091, %v1638, 0
      %v1784 = vsel %vm1091, %v1639, 0
      %v1787 = vsel %vm1091, %v1640, 0
      %v1790 = vsel %vm1091, %v1641, 0
      %v1793 = vsel %vm1091, %v1642, 0
      %v1796 = vsel %vm1091, %v1643, 0
      %v1799 = vsel %vm1091, %v1644, 0
      %v1802 = vsel %vm1091, %v1645, 0
      %v1805 = vsel %vm1091, %v1646, 0
      %v1808 = vsel %vm1091, %v1647, 0
      %v1811 = vsel %vm1091, %v1648, 0
      %v1814 = vsel %vm1091, %v1649, 0
      %v1817 = vsel %vm1091, %v1650, 0
      %v1820 = vsel %vm1091, %v1651, 0
      %v1823 = vsel %vm1091, %v1652, 0
      %v1826 = vsel %vm1091, %v1653, 0
      %v1829 = vsel %vm1091, %v1654, 0
      %v1832 = vsel %vm1091, %v1655, 0
      %v1835 = vsel %vm1091, %v1656, 0
      %v1838 = vsel %vm1091, %v1657, 0
      %v1841 = vsel %vm1091, %v1658, 0
      %v1844 = vsel %vm1091, %v1659, 0
      %v1847 = vsel %vm1091, %v1660, 0
      %v1850 = vsel %vm1091, %v1661, 0
      %v1853 = vsel %vm1091, %v1662, 0
      %v1856 = vsel %vm1091, %v1663, 0
      %v1859 = vsel %vm1091, %v1664, 0
      %v1862 = vsel %vm1091, %v1665, 0
      %v1865 = vsel %vm1091, %v1666, 0
      %v1868 = vsel %vm1091, %v1667, 0
      %1870 = vmatprep.subr.mxu0 0.0
      %1871 = vmatpush1.msra.mxu0 %v1668
      %1872 = vmatprep.subr.mxu0 0.0
      %1873 = vmatpush1.msra.mxu0 %v1669
      %1874 = vmatprep.subr.mxu0 0.0
      %1875 = vmatpush1.msra.mxu0 %v1670
      %1876 = vmatprep.subr.mxu0 0.0
      %1877 = vmatpush1.msra.mxu0 0.0
      %1878 = vmatprep.subr.mxu0 0.0
      %1879 = vmatpush1.msra.mxu0 0.0
      %1880 = vmatprep.subr.mxu0 0.0
      %1881 = vmatpush1.msra.mxu0 0.0
      %1882 = vmatprep.subr.mxu0 0.0
      %1883 = vmatpush1.msra.mxu0 0.0
      %1884 = vmatprep.subr.mxu0 0.0
      %1885 = vmatpush1.msra.mxu0 0.0
      %1886 = vmatprep.subr.mxu0 0.0
      %1887 = vmatpush1.msra.mxu0 0.0
      %1888 = vmatprep.subr.mxu0 0.0
      %1889 = vmatpush1.msra.mxu0 0.0
      %1890 = vmatprep.subr.mxu0 0.0
      %1891 = vmatpush1.msra.mxu0 0.0
      %1892 = vmatprep.subr.mxu0 0.0
      %1893 = vmatpush1.msra.mxu0 0.0
      %1894 = vmatprep.subr.mxu0 0.0
      %1895 = vmatpush1.msra.mxu0 0.0
      %1896 = vmatprep.subr.mxu0 0.0
      %1897 = vmatpush1.msra.mxu0 0.0
      %1898 = vmatprep.subr.mxu0 0.0
      %1899 = vmatpush1.msra.mxu0 0.0
      %1900 = vmatprep.subr.mxu0 0.0
      %1901 = vmatpush1.msra.mxu0 0.0
      %1902 = vmatprep.subr.mxu0 0.0
      %1903 = vmatpush1.msra.mxu0 0.0
      %1904 = vmatprep.subr.mxu0 0.0
      %1905 = vmatpush1.msra.mxu0 0.0
      %1906 = vmatprep.subr.mxu0 0.0
      %1907 = vmatpush1.msra.mxu0 0.0
      %1908 = vmatprep.subr.mxu0 0.0
      %1909 = vmatpush1.msra.mxu0 0.0
      %1910 = vmatprep.subr.mxu0 0.0
      %1911 = vmatpush1.msra.mxu0 0.0
      %1912 = vmatprep.subr.mxu0 0.0
      %1913 = vmatpush1.msra.mxu0 0.0
      %1914 = vmatprep.subr.mxu0 0.0
      %1915 = vmatpush1.msra.mxu0 0.0
      %1916 = vmatprep.subr.mxu0 0.0
      %1917 = vmatpush1.msra.mxu0 0.0
      %1918 = vmatprep.subr.mxu0 0.0
      %1919 = vmatpush1.msra.mxu0 0.0
      %1920 = vmatprep.subr.mxu0 0.0
      %1921 = vmatpush1.msra.mxu0 0.0
      %1922 = vmatprep.subr.mxu0 0.0
      %1923 = vmatpush1.msra.mxu0 0.0
      %1924 = vmatprep.subr.mxu0 0.0
      %1925 = vmatpush1.msra.mxu0 0.0
      %1926 = vmatprep.subr.mxu0 0.0
      %1927 = vmatpush1.msra.mxu0 0.0
      %1928 = vmatprep.subr.mxu0 0.0
      %1929 = vmatpush1.msra.mxu0 0.0
      %1930 = vmatprep.subr.mxu0 0.0
      %1931 = vmatpush1.msra.mxu0 0.0
      %1932 = vmatprep.subr.mxu0 0.0
      %1933 = vmatpush1.msra.mxu0 0.0
      %1934 = vmatprep.mubr.f32.mxu0 0.0
      %1935 = vmatmul.mubr.f32.gmra.mrb[0].mxu0 %v1679
      %v1936 = vpop.f32.mrb[0].mxu0
      %v1937 = vadd.f32 %v1676, %v1936
      %v1938 = vpop.f32.mrb[0].mxu0
      %1939 = vmatprep.mubr.f32.mxu0 0.0
      %1940 = vmatmul.mubr.f32.gmra.mrb[0].mxu0 %v1682
      %v1941 = vpop.f32.mrb[0].mxu0
      %v1942 = vadd.f32 %v1676, %v1941
      %v1943 = vpop.f32.mrb[0].mxu0
      %1944 = vmatprep.mubr.f32.mxu0 0.0
      %1945 = vmatmul.mubr.f32.gmra.mrb[0].mxu0 %v1685
      %v1946 = vpop.f32.mrb[0].mxu0
      %v1947 = vadd.f32 %v1676, %v1946
      %v1948 = vpop.f32.mrb[0].mxu0
      %1949 = vmatprep.mubr.f32.mxu0 0.0
      %1950 = vmatmul.mubr.f32.gmra.mrb[0].mxu0 %v1688
      %v1951 = vpop.f32.mrb[0].mxu0
      %v1952 = vadd.f32 %v1676, %v1951
      %v1953 = vpop.f32.mrb[0].mxu0
      %1954 = vmatprep.mubr.f32.mxu0 0.0
      %1955 = vmatmul.mubr.f32.gmra.mrb[0].mxu0 %v1691
      %v1956 = vpop.f32.mrb[0].mxu0
      %v1957 = vadd.f32 %v1676, %v1956
      %v1958 = vpop.f32.mrb[0].mxu0
      %1959 = vmatprep.mubr.f32.mxu0 0.0
      %1960 = vmatmul.mubr.f32.gmra.mrb[0].mxu0 %v1694
      %v1961 = vpop.f32.mrb[0].mxu0
      %v1962 = vadd.f32 %v1676, %v1961
      %v1963 = vpop.f32.mrb[0].mxu0
      %1964 = vmatprep.mubr.f32.mxu0 0.0
      %1965 = vmatmul.mubr.f32.gmra.mrb[0].mxu0 %v1697
      %v1966 = vpop.f32.mrb[0].mxu0
      %v1967 = vadd.f32 %v1676, %v1966
      %v1968 = vpop.f32.mrb[0].mxu0
      %1969 = vmatprep.mubr.f32.mxu0 0.0
      %1970 = vmatmul.mubr.f32.gmra.mrb[0].mxu0 %v1700
      %v1971 = vpop.f32.mrb[0].mxu0
      %v1972 = vadd.f32 %v1676, %v1971
      %v1973 = vpop.f32.mrb[0].mxu0
      %1974 = vmatprep.mubr.f32.mxu0 0.0
      %1975 = vmatmul.mubr.f32.gmra.mrb[0].mxu0 %v1703
      %v1976 = vpop.f32.mrb[0].mxu0
      %v1977 = vadd.f32 %v1676, %v1976
      %v1978 = vpop.f32.mrb[0].mxu0
      %1979 = vmatprep.mubr.f32.mxu0 0.0
      %1980 = vmatmul.mubr.f32.gmra.mrb[0].mxu0 %v1706
      %v1981 = vpop.f32.mrb[0].mxu0
      %v1982 = vadd.f32 %v1676, %v1981
      %v1983 = vpop.f32.mrb[0].mxu0
      %1984 = vmatprep.mubr.f32.mxu0 0.0
      %1985 = vmatmul.mubr.f32.gmra.mrb[0].mxu0 %v1709
      %v1986 = vpop.f32.mrb[0].mxu0
      %v1987 = vadd.f32 %v1676, %v1986
      %v1988 = vpop.f32.mrb[0].mxu0
      %1989 = vmatprep.mubr.f32.mxu0 0.0
      %1990 = vmatmul.mubr.f32.gmra.mrb[0].mxu0 %v1712
      %v1991 = vpop.f32.mrb[0].mxu0
      %v1992 = vadd.f32 %v1676, %v1991
      %v1993 = vpop.f32.mrb[0].mxu0
      %1994 = vmatprep.mubr.f32.mxu0 0.0
      %1995 = vmatmul.mubr.f32.gmra.mrb[0].mxu0 %v1715
      %v1996 = vpop.f32.mrb[0].mxu0
      %v1997 = vadd.f32 %v1676, %v1996
      %v1998 = vpop.f32.mrb[0].mxu0
      %1999 = vmatprep.mubr.f32.mxu0 0.0
      %2000 = vmatmul.mubr.f32.gmra.mrb[0].mxu0 %v1718
      %v2001 = vpop.f32.mrb[0].mxu0
      %v2002 = vadd.f32 %v1676, %v2001
      %v2003 = vpop.f32.mrb[0].mxu0
      %2004 = vmatprep.mubr.f32.mxu0 0.0
      %2005 = vmatmul.mubr.f32.gmra.mrb[0].mxu0 %v1721
      %v2006 = vpop.f32.mrb[0].mxu0
      %v2007 = vadd.f32 %v1676, %v2006
      %v2008 = vpop.f32.mrb[0].mxu0
      %2009 = vmatprep.mubr.f32.mxu0 0.0
      %2010 = vmatmul.mubr.f32.gmra.mrb[0].mxu0 %v1724
      %v2011 = vpop.f32.mrb[0].mxu0
      %v2012 = vadd.f32 %v1676, %v2011
      %v2013 = vpop.f32.mrb[0].mxu0
      %2014 = vmatprep.mubr.f32.mxu0 0.0
      %2015 = vmatmul.mubr.f32.gmra.mrb[0].mxu0 %v1727
      %v2016 = vpop.f32.mrb[0].mxu0
      %v2017 = vadd.f32 %v1676, %v2016
      %v2018 = vpop.f32.mrb[0].mxu0
      %2019 = vmatprep.mubr.f32.mxu0 0.0
      %2020 = vmatmul.mubr.f32.gmra.mrb[0].mxu0 %v1730
      %v2021 = vpop.f32.mrb[0].mxu0
      %v2022 = vadd.f32 %v1676, %v2021
      %v2023 = vpop.f32.mrb[0].mxu0
      %2024 = vmatprep.mubr.f32.mxu0 0.0
      %2025 = vmatmul.mubr.f32.gmra.mrb[0].mxu0 %v1733
      %v2026 = vpop.f32.mrb[0].mxu0
      %v2027 = vadd.f32 %v1676, %v2026
      %v2028 = vpop.f32.mrb[0].mxu0
      %2029 = vmatprep.mubr.f32.mxu0 0.0
      %2030 = vmatmul.mubr.f32.gmra.mrb[0].mxu0 %v1736
      %v2031 = vpop.f32.mrb[0].mxu0
      %v2032 = vadd.f32 %v1676, %v2031
      %v2033 = vpop.f32.mrb[0].mxu0
      %2034 = vmatprep.mubr.f32.mxu0 0.0
      %2035 = vmatmul.mubr.f32.gmra.mrb[0].mxu0 %v1739
      %v2036 = vpop.f32.mrb[0].mxu0
      %v2037 = vadd.f32 %v1676, %v2036
      %v2038 = vpop.f32.mrb[0].mxu0
      %2039 = vmatprep.mubr.f32.mxu0 0.0
      %2040 = vmatmul.mubr.f32.gmra.mrb[0].mxu0 %v1742
      %v2041 = vpop.f32.mrb[0].mxu0
      %v2042 = vadd.f32 %v1676, %v2041
      %v2043 = vpop.f32.mrb[0].mxu0
      %2044 = vmatprep.mubr.f32.mxu0 0.0
      %2045 = vmatmul.mubr.f32.gmra.mrb[0].mxu0 %v1745
      %v2046 = vpop.f32.mrb[0].mxu0
      %v2047 = vadd.f32 %v1676, %v2046
      %v2048 = vpop.f32.mrb[0].mxu0
      %2049 = vmatprep.mubr.f32.mxu0 0.0
      %2050 = vmatmul.mubr.f32.gmra.mrb[0].mxu0 %v1748
      %v2051 = vpop.f32.mrb[0].mxu0
      %v2052 = vadd.f32 %v1676, %v2051
      %v2053 = vpop.f32.mrb[0].mxu0
      %2054 = vmatprep.mubr.f32.mxu0 0.0
      %2055 = vmatmul.mubr.f32.gmra.mrb[0].mxu0 %v1751
      %v2056 = vpop.f32.mrb[0].mxu0
      %v2057 = vadd.f32 %v1676, %v2056
      %v2058 = vpop.f32.mrb[0].mxu0
      %2059 = vmatprep.mubr.f32.mxu0 0.0
      %2060 = vmatmul.mubr.f32.gmra.mrb[0].mxu0 %v1754
      %v2061 = vpop.f32.mrb[0].mxu0
      %v2062 = vadd.f32 %v1676, %v2061
      %v2063 = vpop.f32.mrb[0].mxu0
      %2064 = vmatprep.mubr.f32.mxu0 0.0
      %2065 = vmatmul.mubr.f32.gmra.mrb[0].mxu0 %v1757
      %v2066 = vpop.f32.mrb[0].mxu0
      %v2067 = vadd.f32 %v1676, %v2066
      %v2068 = vpop.f32.mrb[0].mxu0
      %2069 = vmatprep.mubr.f32.mxu0 0.0
      %2070 = vmatmul.mubr.f32.gmra.mrb[0].mxu0 %v1760
      %v2071 = vpop.f32.mrb[0].mxu0
      %v2072 = vadd.f32 %v1676, %v2071
      %v2073 = vpop.f32.mrb[0].mxu0
      %2074 = vmatprep.mubr.f32.mxu0 0.0
      %2075 = vmatmul.mubr.f32.gmra.mrb[0].mxu0 %v1763
      %v2076 = vpop.f32.mrb[0].mxu0
      %v2077 = vadd.f32 %v1676, %v2076
      %v2078 = vpop.f32.mrb[0].mxu0
      %2079 = vmatprep.mubr.f32.mxu0 0.0
      %2080 = vmatmul.mubr.f32.gmra.mrb[0].mxu0 %v1766
      %v2081 = vpop.f32.mrb[0].mxu0
      %v2082 = vadd.f32 %v1676, %v2081
      %v2083 = vpop.f32.mrb[0].mxu0
      %2084 = vmatprep.mubr.f32.mxu0 0.0
      %2085 = vmatmul.mubr.f32.gmra.mrb[0].mxu0 %v1769
      %v2086 = vpop.f32.mrb[0].mxu0
      %v2087 = vadd.f32 %v1676, %v2086
      %v2088 = vpop.f32.mrb[0].mxu0
      %2089 = vmatprep.mubr.f32.mxu0 0.0
      %2090 = vmatmul.mubr.f32.gmra.mrb[0].mxu0 %v1772
      %v2091 = vpop.f32.mrb[0].mxu0
      %v2092 = vadd.f32 %v1676, %v2091
      %v2093 = vpop.f32.mrb[0].mxu0
      %2094 = vmatprep.mubr.f32.mxu0 0.0
      %2095 = vmatmul.mubr.f32.gmra.mrb[0].mxu0 %v1775
      %v2096 = vpop.f32.mrb[0].mxu0
      %v2097 = vadd.f32 %v1676, %v2096
      %v2098 = vpop.f32.mrb[0].mxu0
      %2099 = vmatprep.mubr.f32.mxu0 0.0
      %2100 = vmatmul.mubr.f32.gmra.mrb[0].mxu0 %v1778
      %v2101 = vpop.f32.mrb[0].mxu0
      %v2102 = vadd.f32 %v1676, %v2101
      %v2103 = vpop.f32.mrb[0].mxu0
      %2104 = vmatprep.mubr.f32.mxu0 0.0
      %2105 = vmatmul.mubr.f32.gmra.mrb[0].mxu0 %v1781
      %v2106 = vpop.f32.mrb[0].mxu0
      %v2107 = vadd.f32 %v1676, %v2106
      %v2108 = vpop.f32.mrb[0].mxu0
      %2109 = vmatprep.mubr.f32.mxu0 0.0
      %2110 = vmatmul.mubr.f32.gmra.mrb[0].mxu0 %v1784
      %v2111 = vpop.f32.mrb[0].mxu0
      %v2112 = vadd.f32 %v1676, %v2111
      %v2113 = vpop.f32.mrb[0].mxu0
      %2114 = vmatprep.mubr.f32.mxu0 0.0
      %2115 = vmatmul.mubr.f32.gmra.mrb[0].mxu0 %v1787
      %v2116 = vpop.f32.mrb[0].mxu0
      %v2117 = vadd.f32 %v1676, %v2116
      %v2118 = vpop.f32.mrb[0].mxu0
      %2119 = vmatprep.mubr.f32.mxu0 0.0
      %2120 = vmatmul.mubr.f32.gmra.mrb[0].mxu0 %v1790
      %v2121 = vpop.f32.mrb[0].mxu0
      %v2122 = vadd.f32 %v1676, %v2121
      %v2123 = vpop.f32.mrb[0].mxu0
      %2124 = vmatprep.mubr.f32.mxu0 0.0
      %2125 = vmatmul.mubr.f32.gmra.mrb[0].mxu0 %v1793
      %v2126 = vpop.f32.mrb[0].mxu0
      %v2127 = vadd.f32 %v1676, %v2126
      %v2128 = vpop.f32.mrb[0].mxu0
      %2129 = vmatprep.mubr.f32.mxu0 0.0
      %2130 = vmatmul.mubr.f32.gmra.mrb[0].mxu0 %v1796
      %v2131 = vpop.f32.mrb[0].mxu0
      %v2132 = vadd.f32 %v1676, %v2131
      %v2133 = vpop.f32.mrb[0].mxu0
      %2134 = vmatprep.mubr.f32.mxu0 0.0
      %2135 = vmatmul.mubr.f32.gmra.mrb[0].mxu0 %v1799
      %v2136 = vpop.f32.mrb[0].mxu0
      %v2137 = vadd.f32 %v1676, %v2136
      %v2138 = vpop.f32.mrb[0].mxu0
      %2139 = vmatprep.mubr.f32.mxu0 0.0
      %2140 = vmatmul.mubr.f32.gmra.mrb[0].mxu0 %v1802
      %v2141 = vpop.f32.mrb[0].mxu0
      %v2142 = vadd.f32 %v1676, %v2141
      %v2143 = vpop.f32.mrb[0].mxu0
      %2144 = vmatprep.mubr.f32.mxu0 0.0
      %2145 = vmatmul.mubr.f32.gmra.mrb[0].mxu0 %v1805
      %v2146 = vpop.f32.mrb[0].mxu0
      %v2147 = vadd.f32 %v1676, %v2146
      %v2148 = vpop.f32.mrb[0].mxu0
      %2149 = vmatprep.mubr.f32.mxu0 0.0
      %2150 = vmatmul.mubr.f32.gmra.mrb[0].mxu0 %v1808
      %v2151 = vpop.f32.mrb[0].mxu0
      %v2152 = vadd.f32 %v1676, %v2151
      %v2153 = vpop.f32.mrb[0].mxu0
      %2154 = vmatprep.mubr.f32.mxu0 0.0
      %2155 = vmatmul.mubr.f32.gmra.mrb[0].mxu0 %v1811
      %v2156 = vpop.f32.mrb[0].mxu0
      %v2157 = vadd.f32 %v1676, %v2156
      %v2158 = vpop.f32.mrb[0].mxu0
      %2159 = vmatprep.mubr.f32.mxu0 0.0
      %2160 = vmatmul.mubr.f32.gmra.mrb[0].mxu0 %v1814
      %v2161 = vpop.f32.mrb[0].mxu0
      %v2162 = vadd.f32 %v1676, %v2161
      %v2163 = vpop.f32.mrb[0].mxu0
      %2164 = vmatprep.mubr.f32.mxu0 0.0
      %2165 = vmatmul.mubr.f32.gmra.mrb[0].mxu0 %v1817
      %v2166 = vpop.f32.mrb[0].mxu0
      %v2167 = vadd.f32 %v1676, %v2166
      %v2168 = vpop.f32.mrb[0].mxu0
      %2169 = vmatprep.mubr.f32.mxu0 0.0
      %2170 = vmatmul.mubr.f32.gmra.mrb[0].mxu0 %v1820
      %v2171 = vpop.f32.mrb[0].mxu0
      %v2172 = vadd.f32 %v1676, %v2171
      %v2173 = vpop.f32.mrb[0].mxu0
      %2174 = vmatprep.mubr.f32.mxu0 0.0
      %2175 = vmatmul.mubr.f32.gmra.mrb[0].mxu0 %v1823
      %v2176 = vpop.f32.mrb[0].mxu0
      %v2177 = vadd.f32 %v1676, %v2176
      %v2178 = vpop.f32.mrb[0].mxu0
      %2179 = vmatprep.mubr.f32.mxu0 0.0
      %2180 = vmatmul.mubr.f32.gmra.mrb[0].mxu0 %v1826
      %v2181 = vpop.f32.mrb[0].mxu0
      %v2182 = vadd.f32 %v1676, %v2181
      %v2183 = vpop.f32.mrb[0].mxu0
      %2184 = vmatprep.mubr.f32.mxu0 0.0
      %2185 = vmatmul.mubr.f32.gmra.mrb[0].mxu0 %v1829
      %v2186 = vpop.f32.mrb[0].mxu0
      %v2187 = vadd.f32 %v1676, %v2186
      %v2188 = vpop.f32.mrb[0].mxu0
      %2189 = vmatprep.mubr.f32.mxu0 0.0
      %2190 = vmatmul.mubr.f32.gmra.mrb[0].mxu0 %v1832
      %v2191 = vpop.f32.mrb[0].mxu0
      %v2192 = vadd.f32 %v1676, %v2191
      %v2193 = vpop.f32.mrb[0].mxu0
      %2194 = vmatprep.mubr.f32.mxu0 0.0
      %2195 = vmatmul.mubr.f32.gmra.mrb[0].mxu0 %v1835
      %v2196 = vpop.f32.mrb[0].mxu0
      %v2197 = vadd.f32 %v1676, %v2196
      %v2198 = vpop.f32.mrb[0].mxu0
      %2199 = vmatprep.mubr.f32.mxu0 0.0
      %2200 = vmatmul.mubr.f32.gmra.mrb[0].mxu0 %v1838
      %v2201 = vpop.f32.mrb[0].mxu0
      %v2202 = vadd.f32 %v1676, %v2201
      %v2203 = vpop.f32.mrb[0].mxu0
      %2204 = vmatprep.mubr.f32.mxu0 0.0
      %2205 = vmatmul.mubr.f32.gmra.mrb[0].mxu0 %v1841
      %v2206 = vpop.f32.mrb[0].mxu0
      %v2207 = vadd.f32 %v1676, %v2206
      %v2208 = vpop.f32.mrb[0].mxu0
      %2209 = vmatprep.mubr.f32.mxu0 0.0
      %2210 = vmatmul.mubr.f32.gmra.mrb[0].mxu0 %v1844
      %v2211 = vpop.f32.mrb[0].mxu0
      %v2212 = vadd.f32 %v1676, %v2211
      %v2213 = vpop.f32.mrb[0].mxu0
      %2214 = vmatprep.mubr.f32.mxu0 0.0
      %2215 = vmatmul.mubr.f32.gmra.mrb[0].mxu0 %v1847
      %v2216 = vpop.f32.mrb[0].mxu0
      %v2217 = vadd.f32 %v1676, %v2216
      %v2218 = vpop.f32.mrb[0].mxu0
      %2219 = vmatprep.mubr.f32.mxu0 0.0
      %2220 = vmatmul.mubr.f32.gmra.mrb[0].mxu0 %v1850
      %v2221 = vpop.f32.mrb[0].mxu0
      %v2222 = vadd.f32 %v1676, %v2221
      %v2223 = vpop.f32.mrb[0].mxu0
      %2224 = vmatprep.mubr.f32.mxu0 0.0
      %2225 = vmatmul.mubr.f32.gmra.mrb[0].mxu0 %v1853
      %v2226 = vpop.f32.mrb[0].mxu0
      %v2227 = vadd.f32 %v1676, %v2226
      %v2228 = vpop.f32.mrb[0].mxu0
      %2229 = vmatprep.mubr.f32.mxu0 0.0
      %2230 = vmatmul.mubr.f32.gmra.mrb[0].mxu0 %v1856
      %v2231 = vpop.f32.mrb[0].mxu0
      %v2232 = vadd.f32 %v1676, %v2231
      %v2233 = vpop.f32.mrb[0].mxu0
      %2234 = vmatprep.mubr.f32.mxu0 0.0
      %2235 = vmatmul.mubr.f32.gmra.mrb[0].mxu0 %v1859
      %v2236 = vpop.f32.mrb[0].mxu0
      %v2237 = vadd.f32 %v1676, %v2236
      %v2238 = vpop.f32.mrb[0].mxu0
      %2239 = vmatprep.mubr.f32.mxu0 0.0
      %2240 = vmatmul.mubr.f32.gmra.mrb[0].mxu0 %v1862
      %v2241 = vpop.f32.mrb[0].mxu0
      %v2242 = vadd.f32 %v1676, %v2241
      %v2243 = vpop.f32.mrb[0].mxu0
      %2244 = vmatprep.mubr.f32.mxu0 0.0
      %2245 = vmatmul.mubr.f32.gmra.mrb[0].mxu0 %v1865
      %v2246 = vpop.f32.mrb[0].mxu0
      %v2247 = vadd.f32 %v1676, %v2246
      %v2248 = vpop.f32.mrb[0].mxu0
      %2249 = vmatprep.mubr.f32.mxu0 0.0
      %2250 = vmatmul.mubr.f32.gmra.mrb[0].mxu0 %v1868
      %v2251 = vpop.f32.mrb[0].mxu0
      %v2252 = vadd.f32 %v1676, %v2251
      %v2253 = vpop.f32.mrb[0].mxu0
      %2254 = vdwg.mxu0
      %2255 = vst.msk [vmem:[%s248] sm:$0xff] %vm318, %v1937
      %2256 = vst.msk [vmem:[%s248 + $0x8] sm:$0xff] %vm318, %v1942
      %2257 = vst.msk [vmem:[%s248 + $0x10] sm:$0xff] %vm318, %v1947
      %2258 = vst.msk [vmem:[%s248 + $0x18] sm:$0xff] %vm318, %v1952
      %2259 = vst.msk [vmem:[%s248 + $0x20] sm:$0xff] %vm318, %v1957
      %2260 = vst.msk [vmem:[%s248 + $0x28] sm:$0xff] %vm318, %v1962
      %2261 = vst.msk [vmem:[%s248 + $0x30] sm:$0xff] %vm318, %v1967
      %2262 = vst.msk [vmem:[%s248 + $0x38] sm:$0xff] %vm318, %v1972
      %2263 = vst.msk [vmem:[%s248 + $0x40] sm:$0xff] %vm318, %v1977
      %2264 = vst.msk [vmem:[%s248 + $0x48] sm:$0xff] %vm318, %v1982
      %2265 = vst.msk [vmem:[%s248 + $0x50] sm:$0xff] %vm318, %v1987
      %2266 = vst.msk [vmem:[%s248 + $0x58] sm:$0xff] %vm318, %v1992
      %2267 = vst.msk [vmem:[%s248 + $0x60] sm:$0xff] %vm318, %v1997
      %2268 = vst.msk [vmem:[%s248 + $0x68] sm:$0xff] %vm318, %v2002
      %2269 = vst.msk [vmem:[%s248 + $0x70] sm:$0xff] %vm318, %v2007
      %2270 = vst.msk [vmem:[%s248 + $0x78] sm:$0xff] %vm318, %v2012
      %2271 = vst.msk [vmem:[%s248 + $0x80] sm:$0xff] %vm318, %v2017
      %2272 = vst.msk [vmem:[%s248 + $0x88] sm:$0xff] %vm318, %v2022
      %2273 = vst.msk [vmem:[%s248 + $0x90] sm:$0xff] %vm318, %v2027
      %2274 = vst.msk [vmem:[%s248 + $0x98] sm:$0xff] %vm318, %v2032
      %2275 = vst.msk [vmem:[%s248 + $0xa0] sm:$0xff] %vm318, %v2037
      %2276 = vst.msk [vmem:[%s248 + $0xa8] sm:$0xff] %vm318, %v2042
      %2277 = vst.msk [vmem:[%s248 + $0xb0] sm:$0xff] %vm318, %v2047
      %2278 = vst.msk [vmem:[%s248 + $0xb8] sm:$0xff] %vm318, %v2052
      %2279 = vst.msk [vmem:[%s248 + $0xc0] sm:$0xff] %vm318, %v2057
      %2280 = vst.msk [vmem:[%s248 + $0xc8] sm:$0xff] %vm318, %v2062
      %2281 = vst.msk [vmem:[%s248 + $0xd0] sm:$0xff] %vm318, %v2067
      %2282 = vst.msk [vmem:[%s248 + $0xd8] sm:$0xff] %vm318, %v2072
      %2283 = vst.msk [vmem:[%s248 + $0xe0] sm:$0xff] %vm318, %v2077
      %2284 = vst.msk [vmem:[%s248 + $0xe8] sm:$0xff] %vm318, %v2082
      %2285 = vst.msk [vmem:[%s248 + $0xf0] sm:$0xff] %vm318, %v2087
      %2286 = vst.msk [vmem:[%s248 + $0xf8] sm:$0xff] %vm318, %v2092
      %2287 = vst.msk [vmem:[%s248 + $0x100] sm:$0xff] %vm318, %v2097
      %2288 = vst.msk [vmem:[%s248 + $0x108] sm:$0xff] %vm318, %v2102
      %2289 = vst.msk [vmem:[%s248 + $0x110] sm:$0xff] %vm318, %v2107
      %2290 = vst.msk [vmem:[%s248 + $0x118] sm:$0xff] %vm318, %v2112
      %2291 = vst.msk [vmem:[%s248 + $0x120] sm:$0xff] %vm318, %v2117
      %2292 = vst.msk [vmem:[%s248 + $0x128] sm:$0xff] %vm318, %v2122
      %2293 = vst.msk [vmem:[%s248 + $0x130] sm:$0xff] %vm318, %v2127
      %2294 = vst.msk [vmem:[%s248 + $0x138] sm:$0xff] %vm318, %v2132
      %2295 = vst.msk [vmem:[%s248 + $0x140] sm:$0xff] %vm318, %v2137
      %2296 = vst.msk [vmem:[%s248 + $0x148] sm:$0xff] %vm318, %v2142
      %2297 = vst.msk [vmem:[%s248 + $0x150] sm:$0xff] %vm318, %v2147
      %2298 = vst.msk [vmem:[%s248 + $0x158] sm:$0xff] %vm318, %v2152
      %2299 = vst.msk [vmem:[%s248 + $0x160] sm:$0xff] %vm318, %v2157
      %2300 = vst.msk [vmem:[%s248 + $0x168] sm:$0xff] %vm318, %v2162
      %2301 = vst.msk [vmem:[%s248 + $0x170] sm:$0xff] %vm318, %v2167
      %2302 = vst.msk [vmem:[%s248 + $0x178] sm:$0xff] %vm318, %v2172
      %2303 = vst.msk [vmem:[%s248 + $0x180] sm:$0xff] %vm318, %v2177
      %2304 = vst.msk [vmem:[%s248 + $0x188] sm:$0xff] %vm318, %v2182
      %2305 = vst.msk [vmem:[%s248 + $0x190] sm:$0xff] %vm318, %v2187
      %2306 = vst.msk [vmem:[%s248 + $0x198] sm:$0xff] %vm318, %v2192
      %2307 = vst.msk [vmem:[%s248 + $0x1a0] sm:$0xff] %vm318, %v2197
      %2308 = vst.msk [vmem:[%s248 + $0x1a8] sm:$0xff] %vm318, %v2202
      %2309 = vst.msk [vmem:[%s248 + $0x1b0] sm:$0xff] %vm318, %v2207
      %2310 = vst.msk [vmem:[%s248 + $0x1b8] sm:$0xff] %vm318, %v2212
      %2311 = vst.msk [vmem:[%s248 + $0x1c0] sm:$0xff] %vm318, %v2217
      %2312 = vst.msk [vmem:[%s248 + $0x1c8] sm:$0xff] %vm318, %v2222
      %2313 = vst.msk [vmem:[%s248 + $0x1d0] sm:$0xff] %vm318, %v2227
      %2314 = vst.msk [vmem:[%s248 + $0x1d8] sm:$0xff] %vm318, %v2232
      %2315 = vst.msk [vmem:[%s248 + $0x1e0] sm:$0xff] %vm318, %v2237
      %2316 = vst.msk [vmem:[%s248 + $0x1e8] sm:$0xff] %vm318, %v2242
      %2317 = vst.msk [vmem:[%s248 + $0x1f0] sm:$0xff] %vm318, %v2247
      %2318 = vst.msk [vmem:[%s248 + $0x1f8] sm:$0xff] %vm318, %v2252
      %s2319 = smul.u32 64, %s16
      %p2320 = scmp.lt.s32.totalorder %s2319, 127
      %s2321 = scalar_select %p2320, %s2319, 127
      %s2322 = smul.addr %s2321, 8
      %s2323 = scalar_lea.vmem %s5, %s2322
      // Predicated region
      $region41: #{tpu_custom_call.1} parent=39 // pred_check
        %p2324 = pneg %p149
      $region42: #{tpu_custom_call.1} parent=39 // pred_check_branch
        %2326 = sbr.rel (%p2324) target = $region44
      $region43: #{tpu_custom_call.1} parent=39 // pred_region
        %s2327 = smul.u32 64, %s16
      $region44: #{tpu_custom_call.1} parent=39 // pred_fallthru
        _
    $region40: #{tpu_custom_call.1} parent=5 // pred_fallthru
      _
    %p2328 = scmp.le.s32.totalorder 2, %s11
    // Predicated region
    $region45: #{tpu_custom_call.1} parent=5 // pred_check
      %p2329 = pneg %p2328
    $region46: #{tpu_custom_call.1} parent=5 // pred_check_branch
      %2331 = sbr.rel (%p2329) target = $region48
    $region47: #{tpu_custom_call.1} parent=5 // pred_region
      %s2332 = ssub.s32 %s11, 2
      // Predicated region
      $region49: #{tpu_custom_call.1} parent=47 // pred_check
        %p2333 = pneg %p155
      $region50: #{tpu_custom_call.1} parent=47 // pred_check_branch
        %2335 = sbr.rel (%p2333) target = $region52
      $region51: #{tpu_custom_call.1} parent=47 // pred_region
        %s2336 = smul.u32 64, %s17
        %p2337 = scmp.lt.s32.totalorder %s2336, 127
        %s2338 = scalar_select %p2337, %s2336, 127
        %s2339 = smul.addr %s2338, 8
        %s2340 = scalar_lea.vmem %s5, %s2339
      $region52: #{tpu_custom_call.1} parent=47 // pred_fallthru
        _
    $region48: #{tpu_custom_call.1} parent=5 // pred_fallthru
      _
  $region6: #{tpu_custom_call.1} parent=0 // loop_footer
    %s15 = sadd.s32 1, %s11
  $region7: #{tpu_custom_call.1} parent=0 // loop_footer_branch
    %10 = sbr.rel target = $region3
  $region8: #{tpu_custom_call.1} parent=0 // loop_exit
    _

</llo_original>
